<compile_context>
chip_gen: v6e
topology: v6e:2x2x1
jax: 0.10.0
libtpu: 0.0.40
codegen_flags: <defaults>
</compile_context>

<pallas_src>
import jax
import jax.numpy as jnp
from jax import lax
from jax.experimental import pallas as pl
from jax.experimental.pallas import tpu as pltpu


def gru_chunk_kernel(x_ref, wih_ref, whh_ref, bgi_ref, bhn_ref,
                     out_ref, hn_ref, h_ref):
    """One time-chunk of a single-layer GRU.

    x_ref:   (Tc, Bp, Hp)  bf16  embedded inputs, time-major (streamed)
    wih_ref: (Hp, 3Hp)     bf16  W_ih^T, gates packed [r | z | n], lane-aligned
    whh_ref: (Hp, 3Hp)     bf16  W_hh^T, same packing
    bgi_ref: (1, 3Hp)      f32   b_ih + [b_hr, b_hz, 0]  (folded bias)
    bhn_ref: (1, Hp)       f32   b_hn (must stay inside r * (...) term)
    out_ref: (Bp, Tc, Hp)  f32   hidden state per step, batch-major
    hn_ref:  (Bp, Hp)      f32   final hidden state (resident block)
    h_ref:   (Bp, Hp)      f32   VMEM scratch carrying h across chunks
    """
    Tc, Bp, Hp = x_ref.shape

    # h_0 = zeros (PyTorch default) -- only on the first chunk.
    @pl.when(pl.program_id(0) == 0)
    def _():
        h_ref[...] = jnp.zeros_like(h_ref)

    # Hoisted input-side matmul for the whole chunk: (Tc*Bp, Hp) @ (Hp, 3Hp).
    x_flat = x_ref[...].reshape(Tc * Bp, Hp)
    gi_all = jnp.dot(x_flat, wih_ref[...],
                     preferred_element_type=jnp.float32) + bgi_ref[...]

    whh = whh_ref[...]          # resident bf16 weights, load once
    bhn = bhn_ref[...]          # (1, Hp)

    # Static (unrolled) recurrence over the chunk; grid axis bounds live ranges.
    for lt in range(Tc):
        h_prev = h_ref[...]                                   # (Bp, Hp) f32
        gh = jnp.dot(h_prev.astype(whh.dtype), whh,
                     preferred_element_type=jnp.float32)      # (Bp, 3Hp)
        gi = gi_all[lt * Bp:(lt + 1) * Bp]                    # (Bp, 3Hp)

        r = jax.nn.sigmoid(gi[:, 0:Hp] + gh[:, 0:Hp])
        z = jax.nn.sigmoid(gi[:, Hp:2 * Hp] + gh[:, Hp:2 * Hp])
        n = jnp.tanh(gi[:, 2 * Hp:3 * Hp] + r * (gh[:, 2 * Hp:3 * Hp] + bhn))
        h_new = (1.0 - z) * n + z * h_prev

        h_ref[...] = h_new
        out_ref[:, lt, :] = h_new.astype(out_ref.dtype)

    hn_ref[...] = h_ref[...].astype(hn_ref.dtype)


def base_rnn_forward(tokens, embedding, w_ih, w_hh, b_ih, b_hh,
                     input_dropout_p=0.0, time_chunk=8):
    """Embedding gather + (identity) input dropout, then Pallas GRU.

    tokens:    (B, T) int32
    embedding: (vocab_size, H) float32
    w_ih:      (3H, H)  (PyTorch GRU weight_ih_l0 layout, gate order r, z, n)
    w_hh:      (3H, H)
    b_ih, b_hh:(3H,)
    returns:   output (B, T, H) f32, h_n (1, B, H) f32   (batch_first GRU).
    """
    B, T = tokens.shape
    H = embedding.shape[1]

    # Lane / sublane aligned padded dims.
    Hp = ((H + 127) // 128) * 128
    Bp = ((B + 7) // 8) * 8

    # Time chunk: must divide T, and be a multiple of 8 (or equal T) so the
    # batch-major output block (Bp, Tc, Hp) satisfies the (8, 128) rule.
    Tc = time_chunk
    if T % Tc != 0 or (Tc % 8 != 0 and Tc != T):
        Tc = T

    # --- glue: embedding gather (time-major) + input dropout (identity) ------
    emb_pad = jnp.pad(embedding, ((0, 0), (0, Hp - H)))          # (V, Hp)
    x_tm = jnp.take(emb_pad, tokens.T, axis=0)                   # (T, B, Hp)
    x_tm = jnp.pad(x_tm, ((0, 0), (0, Bp - B), (0, 0)))          # (T, Bp, Hp)
    x_bf16 = x_tm.astype(jnp.bfloat16)

    # --- gate-wise lane-aligned weight packing: (Hp, 3Hp), bf16 --------------
    def pad2(m):
        return jnp.pad(m, ((0, Hp - m.shape[0]), (0, Hp - m.shape[1])))

    def pad1(v):
        return jnp.pad(v, (0, Hp - v.shape[0]))

    wih_t = jnp.concatenate(
        [pad2(w_ih[g * H:(g + 1) * H, :].T) for g in range(3)], axis=1)
    whh_t = jnp.concatenate(
        [pad2(w_hh[g * H:(g + 1) * H, :].T) for g in range(3)], axis=1)
    wih_bf16 = wih_t.astype(jnp.bfloat16)
    whh_bf16 = whh_t.astype(jnp.bfloat16)

    b_ir, b_iz, b_in = b_ih[0:H], b_ih[H:2 * H], b_ih[2 * H:3 * H]
    b_hr, b_hz, b_hn = b_hh[0:H], b_hh[H:2 * H], b_hh[2 * H:3 * H]
    bgi = jnp.concatenate(
        [pad1(b_ir + b_hr), pad1(b_iz + b_hz), pad1(b_in)]
    ).reshape(1, 3 * Hp).astype(jnp.float32)
    bhn = pad1(b_hn).reshape(1, Hp).astype(jnp.float32)

    grid = (T // Tc,)
    out_padded, hn_padded = pl.pallas_call(
        gru_chunk_kernel,
        out_shape=(jax.ShapeDtypeStruct((Bp, T, Hp), jnp.float32),
                   jax.ShapeDtypeStruct((Bp, Hp), jnp.float32)),
        grid_spec=pltpu.PrefetchScalarGridSpec(
            num_scalar_prefetch=0,
            grid=grid,
            in_specs=[
                pl.BlockSpec((Tc, Bp, Hp), lambda t: (t, 0, 0)),   # streamed x
                pl.BlockSpec((Hp, 3 * Hp), lambda t: (0, 0)),      # W_ih^T
                pl.BlockSpec((Hp, 3 * Hp), lambda t: (0, 0)),      # W_hh^T
                pl.BlockSpec((1, 3 * Hp), lambda t: (0, 0)),       # folded bias
                pl.BlockSpec((1, Hp), lambda t: (0, 0)),           # b_hn
            ],
            out_specs=[
                pl.BlockSpec((Bp, Tc, Hp), lambda t: (0, t, 0)),   # batch-major
                pl.BlockSpec((Bp, Hp), lambda t: (0, 0)),          # h_n
            ],
            scratch_shapes=[pltpu.VMEM((Bp, Hp), jnp.float32)],
        ),
        compiler_params=pltpu.CompilerParams(
            dimension_semantics=("arbitrary",),   # time recurrence is serial
        ),
    )(x_bf16, wih_bf16, whh_bf16, bgi, bhn)

    output = out_padded[:B, :, :H]                 # strip pad
    h_n = hn_padded[:B, :H][None, :, :]            # (1, B, H)
    return output, h_n


def gru_reference(tokens, embedding, w_ih, w_hh, b_ih, b_hh):
    """Pure-JAX f32 reference of the same forward (PyTorch GRU semantics)."""
    H = embedding.shape[1]
    x_tm = jnp.take(embedding, tokens.T, axis=0)   # (T, B, H)

    def step(h, x_t):
        gi = x_t @ w_ih.T + b_ih
        gh = h @ w_hh.T + b_hh
        i_r, i_z, i_n = gi[:, 0:H], gi[:, H:2 * H], gi[:, 2 * H:3 * H]
        h_r, h_z, h_nn = gh[:, 0:H], gh[:, H:2 * H], gh[:, 2 * H:3 * H]
        r = jax.nn.sigmoid(i_r + h_r)
        z = jax.nn.sigmoid(i_z + h_z)
        n = jnp.tanh(i_n + r * h_nn)
        h_new = (1.0 - z) * n + z * h
        return h_new, h_new

    h0 = jnp.zeros((tokens.shape[0], H), jnp.float32)
    h_last, ys = lax.scan(step, h0, x_tm)
    return jnp.transpose(ys, (1, 0, 2)), h_last[None]


if __name__ == "__main__":
    # BaseRNN(vocab_size=50, max_len=16, hidden_size=32, input_dropout_p=0,
    #         rnn_cell='gru')
    vocab_size = 50
    max_len = 16      # T (two time-chunks of 8 -> exercises the grid carry)
    hidden_size = 32  # H
    batch = 2         # B

    key = jax.random.PRNGKey(0)
    k_tok, k_emb, k_wih, k_whh, k_bih, k_bhh = jax.random.split(key, 6)

    tokens = jax.random.randint(k_tok, (batch, max_len), 0, vocab_size,
                                dtype=jnp.int32)
    embedding = 0.1 * jax.random.normal(
        k_emb, (vocab_size, hidden_size), dtype=jnp.float32)
    w_ih = 0.1 * jax.random.normal(
        k_wih, (3 * hidden_size, hidden_size), dtype=jnp.float32)
    w_hh = 0.1 * jax.random.normal(
        k_whh, (3 * hidden_size, hidden_size), dtype=jnp.float32)
    b_ih = 0.1 * jax.random.normal(k_bih, (3 * hidden_size,), dtype=jnp.float32)
    b_hh = 0.1 * jax.random.normal(k_bhh, (3 * hidden_size,), dtype=jnp.float32)

    output, h_n = base_rnn_forward(tokens, embedding, w_ih, w_hh, b_ih, b_hh,
                                   input_dropout_p=0.0, time_chunk=8)
    jax.block_until_ready(output)
    jax.block_until_ready(h_n)

    assert output.shape == (batch, max_len, hidden_size)
    assert h_n.shape == (1, batch, hidden_size)

    # Numerical check vs pure-JAX f32 reference (bf16 operands -> loose tol).
    ref_out, ref_hn = gru_reference(tokens, embedding, w_ih, w_hh, b_ih, b_hh)
    assert jnp.allclose(output, ref_out, atol=2e-2, rtol=2e-2)
    assert jnp.allclose(h_n, ref_hn, atol=2e-2, rtol=2e-2)

    print("KERNEL_OK")
</pallas_src>

<mosaic_0001>
module attributes {stable_mosaic.version = 11 : i64} {
  func.func @gru_chunk_kernel(%arg0: i32, %arg1: memref<8x8x128xbf16, #tpu.memory_space<vmem>>, %arg2: memref<128x384xbf16, #tpu.memory_space<vmem>>, %arg3: memref<128x384xbf16, #tpu.memory_space<vmem>>, %arg4: memref<1x384xf32, #tpu.memory_space<vmem>>, %arg5: memref<1x128xf32, #tpu.memory_space<vmem>>, %arg6: memref<8x8x128xf32, #tpu.memory_space<vmem>>, %arg7: memref<8x128xf32, #tpu.memory_space<vmem>>, %arg8: memref<8x128xf32, #tpu.memory_space<vmem>>) attributes {dimension_semantics = [#tpu.dimension_semantics<arbitrary>], iteration_bounds = array<i64: 2>, scalar_prefetch = 0 : i64, scratch_operands = 1 : i64, tpu.core_type = #tpu.core_type<tc>, window_params = [{transform_indices = @transform_0, window_bounds = array<i64: 8, 8, 128>}, {pipeline_mode = #tpu.pipeline_mode<synchronous>, transform_indices = @transform_1, window_bounds = array<i64: 128, 384>}, {pipeline_mode = #tpu.pipeline_mode<synchronous>, transform_indices = @transform_2, window_bounds = array<i64: 128, 384>}, {pipeline_mode = #tpu.pipeline_mode<synchronous>, transform_indices = @transform_3, window_bounds = array<i64: 1, 384>}, {pipeline_mode = #tpu.pipeline_mode<synchronous>, transform_indices = @transform_4, window_bounds = array<i64: 1, 128>}, {transform_indices = @transform_5, window_bounds = array<i64: 8, 8, 128>}, {pipeline_mode = #tpu.pipeline_mode<synchronous>, transform_indices = @transform_6, window_bounds = array<i64: 8, 128>}]} {
    %c0_i32 = arith.constant 0 : i32
    %0 = arith.cmpi eq, %arg0, %c0_i32 : i32
    %1 = arith.extui %0 : i1 to i32
    %c0_i32_0 = arith.constant 0 : i32
    %2 = arith.cmpi ne, %1, %c0_i32_0 : i32
    scf.if %2 {
      %cst_96 = arith.constant 0.000000e+00 : f32
      %302 = vector.broadcast %cst_96 : f32 to vector<8x128xf32>
      %c0_97 = arith.constant 0 : index
      %c0_98 = arith.constant 0 : index
      %303 = vector.load %arg8[%c0_97, %c0_98] : memref<8x128xf32, #tpu.memory_space<vmem>>, vector<8x128xf32>
      tpu.vector_store %arg8[%c0_97, %c0_98], %302 {strides = array<i32>} : memref<8x128xf32, #tpu.memory_space<vmem>>, vector<8x128xf32>,
    } else {
    }
    %c0 = arith.constant 0 : index
    %c0_1 = arith.constant 0 : index
    %c0_2 = arith.constant 0 : index
    %3 = vector.load %arg1[%c0, %c0_1, %c0_2] : memref<8x8x128xbf16, #tpu.memory_space<vmem>>, vector<8x8x128xbf16>
    %4 = vector.shape_cast %3 : vector<8x8x128xbf16> to vector<64x128xbf16>
    %c0_3 = arith.constant 0 : index
    %c0_4 = arith.constant 0 : index
    %5 = vector.load %arg2[%c0_3, %c0_4] : memref<128x384xbf16, #tpu.memory_space<vmem>>, vector<128x384xbf16>
    %cst = arith.constant dense<0.000000e+00> : vector<64x384xf32>
    %6 = tpu.matmul %4, %5, %cst {dimension_numbers = #tpu.dot_dimension_numbers<[1], [0], [0], [1], [0, 0, 1, 1], [], []>} : vector<64x128xbf16>, vector<128x384xbf16>, vector<64x384xf32> -> vector<64x384xf32>
    %c0_5 = arith.constant 0 : index
    %c0_6 = arith.constant 0 : index
    %7 = vector.load %arg4[%c0_5, %c0_6] : memref<1x384xf32, #tpu.memory_space<vmem>>, vector<1x384xf32>
    %8 = vector.broadcast %7 : vector<1x384xf32> to vector<64x384xf32>
    %9 = arith.addf %6, %8 : vector<64x384xf32>
    %c0_7 = arith.constant 0 : index
    %c0_8 = arith.constant 0 : index
    %10 = vector.load %arg3[%c0_7, %c0_8] : memref<128x384xbf16, #tpu.memory_space<vmem>>, vector<128x384xbf16>
    %c0_9 = arith.constant 0 : index
    %c0_10 = arith.constant 0 : index
    %11 = vector.load %arg5[%c0_9, %c0_10] : memref<1x128xf32, #tpu.memory_space<vmem>>, vector<1x128xf32>
    %c0_11 = arith.constant 0 : index
    %c0_12 = arith.constant 0 : index
    %12 = vector.load %arg8[%c0_11, %c0_12] : memref<8x128xf32, #tpu.memory_space<vmem>>, vector<8x128xf32>
    %13 = arith.truncf %12 : vector<8x128xf32> to vector<8x128xbf16>
    %cst_13 = arith.constant dense<0.000000e+00> : vector<8x384xf32>
    %14 = tpu.matmul %13, %10, %cst_13 {dimension_numbers = #tpu.dot_dimension_numbers<[1], [0], [0], [1], [0, 0, 1, 1], [], []>} : vector<8x128xbf16>, vector<128x384xbf16>, vector<8x384xf32> -> vector<8x384xf32>
    %15 = vector.extract_strided_slice %9 {offsets = [0, 0], sizes = [8, 384], strides = [1, 1]} : vector<64x384xf32> to vector<8x384xf32>
    %16 = vector.extract_strided_slice %15 {offsets = [0, 0], sizes = [8, 128], strides = [1, 1]} : vector<8x384xf32> to vector<8x128xf32>
    %17 = vector.extract_strided_slice %14 {offsets = [0, 0], sizes = [8, 128], strides = [1, 1]} : vector<8x384xf32> to vector<8x128xf32>
    %18 = arith.addf %16, %17 : vector<8x128xf32>
    %19 = arith.negf %18 : vector<8x128xf32>
    %20 = math.exp %19 : vector<8x128xf32>
    %cst_14 = arith.constant 1.000000e+00 : f32
    %21 = vector.broadcast %cst_14 : f32 to vector<8x128xf32>
    %22 = arith.addf %21, %20 : vector<8x128xf32>
    %23 = arith.divf %21, %22 : vector<8x128xf32>
    %24 = vector.extract_strided_slice %15 {offsets = [0, 128], sizes = [8, 128], strides = [1, 1]} : vector<8x384xf32> to vector<8x128xf32>
    %25 = vector.extract_strided_slice %14 {offsets = [0, 128], sizes = [8, 128], strides = [1, 1]} : vector<8x384xf32> to vector<8x128xf32>
    %26 = arith.addf %24, %25 : vector<8x128xf32>
    %27 = arith.negf %26 : vector<8x128xf32>
    %28 = math.exp %27 : vector<8x128xf32>
    %cst_15 = arith.constant 1.000000e+00 : f32
    %29 = vector.broadcast %cst_15 : f32 to vector<8x128xf32>
    %30 = arith.addf %29, %28 : vector<8x128xf32>
    %31 = arith.divf %29, %30 : vector<8x128xf32>
    %32 = vector.extract_strided_slice %15 {offsets = [0, 256], sizes = [8, 128], strides = [1, 1]} : vector<8x384xf32> to vector<8x128xf32>
    %33 = vector.extract_strided_slice %14 {offsets = [0, 256], sizes = [8, 128], strides = [1, 1]} : vector<8x384xf32> to vector<8x128xf32>
    %34 = vector.broadcast %11 : vector<1x128xf32> to vector<8x128xf32>
    %35 = arith.addf %33, %34 : vector<8x128xf32>
    %36 = arith.mulf %23, %35 : vector<8x128xf32>
    %37 = arith.addf %32, %36 : vector<8x128xf32>
    %38 = math.tanh %37 : vector<8x128xf32>
    %cst_16 = arith.constant 1.000000e+00 : f32
    %39 = vector.broadcast %cst_16 : f32 to vector<8x128xf32>
    %40 = arith.subf %39, %31 : vector<8x128xf32>
    %41 = arith.mulf %40, %38 : vector<8x128xf32>
    %42 = arith.mulf %31, %12 : vector<8x128xf32>
    %43 = arith.addf %41, %42 : vector<8x128xf32>
    %c0_17 = arith.constant 0 : index
    %c0_18 = arith.constant 0 : index
    %44 = vector.load %arg8[%c0_17, %c0_18] : memref<8x128xf32, #tpu.memory_space<vmem>>, vector<8x128xf32>
    tpu.vector_store %arg8[%c0_17, %c0_18], %43 {strides = array<i32>} : memref<8x128xf32, #tpu.memory_space<vmem>>, vector<8x128xf32>,
    %c0_19 = arith.constant 0 : index
    %c0_20 = arith.constant 0 : index
    %c0_21 = arith.constant 0 : index
    %45 = vector.load %arg6[%c0_19, %c0_20, %c0_21] : memref<8x8x128xf32, #tpu.memory_space<vmem>>, vector<8x1x128xf32>
    %46 = vector.shape_cast %45 : vector<8x1x128xf32> to vector<8x128xf32>
    %47 = vector.shape_cast %43 : vector<8x128xf32> to vector<8x1x128xf32>
    tpu.vector_store %arg6[%c0_19, %c0_20, %c0_21], %47 {strides = array<i32>} : memref<8x8x128xf32, #tpu.memory_space<vmem>>, vector<8x1x128xf32>,
    %c0_22 = arith.constant 0 : index
    %c0_23 = arith.constant 0 : index
    %48 = vector.load %arg8[%c0_22, %c0_23] : memref<8x128xf32, #tpu.memory_space<vmem>>, vector<8x128xf32>
    %49 = arith.truncf %48 : vector<8x128xf32> to vector<8x128xbf16>
    %cst_24 = arith.constant dense<0.000000e+00> : vector<8x384xf32>
    %50 = tpu.matmul %49, %10, %cst_24 {dimension_numbers = #tpu.dot_dimension_numbers<[1], [0], [0], [1], [0, 0, 1, 1], [], []>} : vector<8x128xbf16>, vector<128x384xbf16>, vector<8x384xf32> -> vector<8x384xf32>
    %51 = vector.extract_strided_slice %9 {offsets = [8, 0], sizes = [8, 384], strides = [1, 1]} : vector<64x384xf32> to vector<8x384xf32>
    %52 = vector.extract_strided_slice %51 {offsets = [0, 0], sizes = [8, 128], strides = [1, 1]} : vector<8x384xf32> to vector<8x128xf32>
    %53 = vector.extract_strided_slice %50 {offsets = [0, 0], sizes = [8, 128], strides = [1, 1]} : vector<8x384xf32> to vector<8x128xf32>
    %54 = arith.addf %52, %53 : vector<8x128xf32>
    %55 = arith.negf %54 : vector<8x128xf32>
    %56 = math.exp %55 : vector<8x128xf32>
    %cst_25 = arith.constant 1.000000e+00 : f32
    %57 = vector.broadcast %cst_25 : f32 to vector<8x128xf32>
    %58 = arith.addf %57, %56 : vector<8x128xf32>
    %59 = arith.divf %57, %58 : vector<8x128xf32>
    %60 = vector.extract_strided_slice %51 {offsets = [0, 128], sizes = [8, 128], strides = [1, 1]} : vector<8x384xf32> to vector<8x128xf32>
    %61 = vector.extract_strided_slice %50 {offsets = [0, 128], sizes = [8, 128], strides = [1, 1]} : vector<8x384xf32> to vector<8x128xf32>
    %62 = arith.addf %60, %61 : vector<8x128xf32>
    %63 = arith.negf %62 : vector<8x128xf32>
    %64 = math.exp %63 : vector<8x128xf32>
    %cst_26 = arith.constant 1.000000e+00 : f32
    %65 = vector.broadcast %cst_26 : f32 to vector<8x128xf32>
    %66 = arith.addf %65, %64 : vector<8x128xf32>
    %67 = arith.divf %65, %66 : vector<8x128xf32>
    %68 = vector.extract_strided_slice %51 {offsets = [0, 256], sizes = [8, 128], strides = [1, 1]} : vector<8x384xf32> to vector<8x128xf32>
    %69 = vector.extract_strided_slice %50 {offsets = [0, 256], sizes = [8, 128], strides = [1, 1]} : vector<8x384xf32> to vector<8x128xf32>
    %70 = vector.broadcast %11 : vector<1x128xf32> to vector<8x128xf32>
    %71 = arith.addf %69, %70 : vector<8x128xf32>
    %72 = arith.mulf %59, %71 : vector<8x128xf32>
    %73 = arith.addf %68, %72 : vector<8x128xf32>
    %74 = math.tanh %73 : vector<8x128xf32>
    %cst_27 = arith.constant 1.000000e+00 : f32
    %75 = vector.broadcast %cst_27 : f32 to vector<8x128xf32>
    %76 = arith.subf %75, %67 : vector<8x128xf32>
    %77 = arith.mulf %76, %74 : vector<8x128xf32>
    %78 = arith.mulf %67, %48 : vector<8x128xf32>
    %79 = arith.addf %77, %78 : vector<8x128xf32>
    %c0_28 = arith.constant 0 : index
    %c0_29 = arith.constant 0 : index
    %80 = vector.load %arg8[%c0_28, %c0_29] : memref<8x128xf32, #tpu.memory_space<vmem>>, vector<8x128xf32>
    tpu.vector_store %arg8[%c0_28, %c0_29], %79 {strides = array<i32>} : memref<8x128xf32, #tpu.memory_space<vmem>>, vector<8x128xf32>,
    %c0_30 = arith.constant 0 : index
    %c1 = arith.constant 1 : index
    %c0_31 = arith.constant 0 : index
    %81 = vector.load %arg6[%c0_30, %c1, %c0_31] : memref<8x8x128xf32, #tpu.memory_space<vmem>>, vector<8x1x128xf32>
    %82 = vector.shape_cast %81 : vector<8x1x128xf32> to vector<8x128xf32>
    %83 = vector.shape_cast %79 : vector<8x128xf32> to vector<8x1x128xf32>
    tpu.vector_store %arg6[%c0_30, %c1, %c0_31], %83 {strides = array<i32>} : memref<8x8x128xf32, #tpu.memory_space<vmem>>, vector<8x1x128xf32>,
    %c0_32 = arith.constant 0 : index
    %c0_33 = arith.constant 0 : index
    %84 = vector.load %arg8[%c0_32, %c0_33] : memref<8x128xf32, #tpu.memory_space<vmem>>, vector<8x128xf32>
    %85 = arith.truncf %84 : vector<8x128xf32> to vector<8x128xbf16>
    %cst_34 = arith.constant dense<0.000000e+00> : vector<8x384xf32>
    %86 = tpu.matmul %85, %10, %cst_34 {dimension_numbers = #tpu.dot_dimension_numbers<[1], [0], [0], [1], [0, 0, 1, 1], [], []>} : vector<8x128xbf16>, vector<128x384xbf16>, vector<8x384xf32> -> vector<8x384xf32>
    %87 = vector.extract_strided_slice %9 {offsets = [16, 0], sizes = [8, 384], strides = [1, 1]} : vector<64x384xf32> to vector<8x384xf32>
    %88 = vector.extract_strided_slice %87 {offsets = [0, 0], sizes = [8, 128], strides = [1, 1]} : vector<8x384xf32> to vector<8x128xf32>
    %89 = vector.extract_strided_slice %86 {offsets = [0, 0], sizes = [8, 128], strides = [1, 1]} : vector<8x384xf32> to vector<8x128xf32>
    %90 = arith.addf %88, %89 : vector<8x128xf32>
    %91 = arith.negf %90 : vector<8x128xf32>
    %92 = math.exp %91 : vector<8x128xf32>
    %cst_35 = arith.constant 1.000000e+00 : f32
    %93 = vector.broadcast %cst_35 : f32 to vector<8x128xf32>
    %94 = arith.addf %93, %92 : vector<8x128xf32>
    %95 = arith.divf %93, %94 : vector<8x128xf32>
    %96 = vector.extract_strided_slice %87 {offsets = [0, 128], sizes = [8, 128], strides = [1, 1]} : vector<8x384xf32> to vector<8x128xf32>
    %97 = vector.extract_strided_slice %86 {offsets = [0, 128], sizes = [8, 128], strides = [1, 1]} : vector<8x384xf32> to vector<8x128xf32>
    %98 = arith.addf %96, %97 : vector<8x128xf32>
    %99 = arith.negf %98 : vector<8x128xf32>
    %100 = math.exp %99 : vector<8x128xf32>
    %cst_36 = arith.constant 1.000000e+00 : f32
    %101 = vector.broadcast %cst_36 : f32 to vector<8x128xf32>
    %102 = arith.addf %101, %100 : vector<8x128xf32>
    %103 = arith.divf %101, %102 : vector<8x128xf32>
    %104 = vector.extract_strided_slice %87 {offsets = [0, 256], sizes = [8, 128], strides = [1, 1]} : vector<8x384xf32> to vector<8x128xf32>
    %105 = vector.extract_strided_slice %86 {offsets = [0, 256], sizes = [8, 128], strides = [1, 1]} : vector<8x384xf32> to vector<8x128xf32>
    %106 = vector.broadcast %11 : vector<1x128xf32> to vector<8x128xf32>
    %107 = arith.addf %105, %106 : vector<8x128xf32>
    %108 = arith.mulf %95, %107 : vector<8x128xf32>
    %109 = arith.addf %104, %108 : vector<8x128xf32>
    %110 = math.tanh %109 : vector<8x128xf32>
    %cst_37 = arith.constant 1.000000e+00 : f32
    %111 = vector.broadcast %cst_37 : f32 to vector<8x128xf32>
    %112 = arith.subf %111, %103 : vector<8x128xf32>
    %113 = arith.mulf %112, %110 : vector<8x128xf32>
    %114 = arith.mulf %103, %84 : vector<8x128xf32>
    %115 = arith.addf %113, %114 : vector<8x128xf32>
    %c0_38 = arith.constant 0 : index
    %c0_39 = arith.constant 0 : index
    %116 = vector.load %arg8[%c0_38, %c0_39] : memref<8x128xf32, #tpu.memory_space<vmem>>, vector<8x128xf32>
    tpu.vector_store %arg8[%c0_38, %c0_39], %115 {strides = array<i32>} : memref<8x128xf32, #tpu.memory_space<vmem>>, vector<8x128xf32>,
    %c0_40 = arith.constant 0 : index
    %c2 = arith.constant 2 : index
    %c0_41 = arith.constant 0 : index
    %117 = vector.load %arg6[%c0_40, %c2, %c0_41] : memref<8x8x128xf32, #tpu.memory_space<vmem>>, vector<8x1x128xf32>
    %118 = vector.shape_cast %117 : vector<8x1x128xf32> to vector<8x128xf32>
    %119 = vector.shape_cast %115 : vector<8x128xf32> to vector<8x1x128xf32>
    tpu.vector_store %arg6[%c0_40, %c2, %c0_41], %119 {strides = array<i32>} : memref<8x8x128xf32, #tpu.memory_space<vmem>>, vector<8x1x128xf32>,
    %c0_42 = arith.constant 0 : index
    %c0_43 = arith.constant 0 : index
    %120 = vector.load %arg8[%c0_42, %c0_43] : memref<8x128xf32, #tpu.memory_space<vmem>>, vector<8x128xf32>
    %121 = arith.truncf %120 : vector<8x128xf32> to vector<8x128xbf16>
    %cst_44 = arith.constant dense<0.000000e+00> : vector<8x384xf32>
    %122 = tpu.matmul %121, %10, %cst_44 {dimension_numbers = #tpu.dot_dimension_numbers<[1], [0], [0], [1], [0, 0, 1, 1], [], []>} : vector<8x128xbf16>, vector<128x384xbf16>, vector<8x384xf32> -> vector<8x384xf32>
    %123 = vector.extract_strided_slice %9 {offsets = [24, 0], sizes = [8, 384], strides = [1, 1]} : vector<64x384xf32> to vector<8x384xf32>
    %124 = vector.extract_strided_slice %123 {offsets = [0, 0], sizes = [8, 128], strides = [1, 1]} : vector<8x384xf32> to vector<8x128xf32>
    %125 = vector.extract_strided_slice %122 {offsets = [0, 0], sizes = [8, 128], strides = [1, 1]} : vector<8x384xf32> to vector<8x128xf32>
    %126 = arith.addf %124, %125 : vector<8x128xf32>
    %127 = arith.negf %126 : vector<8x128xf32>
    %128 = math.exp %127 : vector<8x128xf32>
    %cst_45 = arith.constant 1.000000e+00 : f32
    %129 = vector.broadcast %cst_45 : f32 to vector<8x128xf32>
    %130 = arith.addf %129, %128 : vector<8x128xf32>
    %131 = arith.divf %129, %130 : vector<8x128xf32>
    %132 = vector.extract_strided_slice %123 {offsets = [0, 128], sizes = [8, 128], strides = [1, 1]} : vector<8x384xf32> to vector<8x128xf32>
    %133 = vector.extract_strided_slice %122 {offsets = [0, 128], sizes = [8, 128], strides = [1, 1]} : vector<8x384xf32> to vector<8x128xf32>
    %134 = arith.addf %132, %133 : vector<8x128xf32>
    %135 = arith.negf %134 : vector<8x128xf32>
    %136 = math.exp %135 : vector<8x128xf32>
    %cst_46 = arith.constant 1.000000e+00 : f32
    %137 = vector.broadcast %cst_46 : f32 to vector<8x128xf32>
    %138 = arith.addf %137, %136 : vector<8x128xf32>
    %139 = arith.divf %137, %138 : vector<8x128xf32>
    %140 = vector.extract_strided_slice %123 {offsets = [0, 256], sizes = [8, 128], strides = [1, 1]} : vector<8x384xf32> to vector<8x128xf32>
    %141 = vector.extract_strided_slice %122 {offsets = [0, 256], sizes = [8, 128], strides = [1, 1]} : vector<8x384xf32> to vector<8x128xf32>
    %142 = vector.broadcast %11 : vector<1x128xf32> to vector<8x128xf32>
    %143 = arith.addf %141, %142 : vector<8x128xf32>
    %144 = arith.mulf %131, %143 : vector<8x128xf32>
    %145 = arith.addf %140, %144 : vector<8x128xf32>
    %146 = math.tanh %145 : vector<8x128xf32>
    %cst_47 = arith.constant 1.000000e+00 : f32
    %147 = vector.broadcast %cst_47 : f32 to vector<8x128xf32>
    %148 = arith.subf %147, %139 : vector<8x128xf32>
    %149 = arith.mulf %148, %146 : vector<8x128xf32>
    %150 = arith.mulf %139, %120 : vector<8x128xf32>
    %151 = arith.addf %149, %150 : vector<8x128xf32>
    %c0_48 = arith.constant 0 : index
    %c0_49 = arith.constant 0 : index
    %152 = vector.load %arg8[%c0_48, %c0_49] : memref<8x128xf32, #tpu.memory_space<vmem>>, vector<8x128xf32>
    tpu.vector_store %arg8[%c0_48, %c0_49], %151 {strides = array<i32>} : memref<8x128xf32, #tpu.memory_space<vmem>>, vector<8x128xf32>,
    %c0_50 = arith.constant 0 : index
    %c3 = arith.constant 3 : index
    %c0_51 = arith.constant 0 : index
    %153 = vector.load %arg6[%c0_50, %c3, %c0_51] : memref<8x8x128xf32, #tpu.memory_space<vmem>>, vector<8x1x128xf32>
    %154 = vector.shape_cast %153 : vector<8x1x128xf32> to vector<8x128xf32>
    %155 = vector.shape_cast %151 : vector<8x128xf32> to vector<8x1x128xf32>
    tpu.vector_store %arg6[%c0_50, %c3, %c0_51], %155 {strides = array<i32>} : memref<8x8x128xf32, #tpu.memory_space<vmem>>, vector<8x1x128xf32>,
    %c0_52 = arith.constant 0 : index
    %c0_53 = arith.constant 0 : index
    %156 = vector.load %arg8[%c0_52, %c0_53] : memref<8x128xf32, #tpu.memory_space<vmem>>, vector<8x128xf32>
    %157 = arith.truncf %156 : vector<8x128xf32> to vector<8x128xbf16>
    %cst_54 = arith.constant dense<0.000000e+00> : vector<8x384xf32>
    %158 = tpu.matmul %157, %10, %cst_54 {dimension_numbers = #tpu.dot_dimension_numbers<[1], [0], [0], [1], [0, 0, 1, 1], [], []>} : vector<8x128xbf16>, vector<128x384xbf16>, vector<8x384xf32> -> vector<8x384xf32>
    %159 = vector.extract_strided_slice %9 {offsets = [32, 0], sizes = [8, 384], strides = [1, 1]} : vector<64x384xf32> to vector<8x384xf32>
    %160 = vector.extract_strided_slice %159 {offsets = [0, 0], sizes = [8, 128], strides = [1, 1]} : vector<8x384xf32> to vector<8x128xf32>
    %161 = vector.extract_strided_slice %158 {offsets = [0, 0], sizes = [8, 128], strides = [1, 1]} : vector<8x384xf32> to vector<8x128xf32>
    %162 = arith.addf %160, %161 : vector<8x128xf32>
    %163 = arith.negf %162 : vector<8x128xf32>
    %164 = math.exp %163 : vector<8x128xf32>
    %cst_55 = arith.constant 1.000000e+00 : f32
    %165 = vector.broadcast %cst_55 : f32 to vector<8x128xf32>
    %166 = arith.addf %165, %164 : vector<8x128xf32>
    %167 = arith.divf %165, %166 : vector<8x128xf32>
    %168 = vector.extract_strided_slice %159 {offsets = [0, 128], sizes = [8, 128], strides = [1, 1]} : vector<8x384xf32> to vector<8x128xf32>
    %169 = vector.extract_strided_slice %158 {offsets = [0, 128], sizes = [8, 128], strides = [1, 1]} : vector<8x384xf32> to vector<8x128xf32>
    %170 = arith.addf %168, %169 : vector<8x128xf32>
    %171 = arith.negf %170 : vector<8x128xf32>
    %172 = math.exp %171 : vector<8x128xf32>
    %cst_56 = arith.constant 1.000000e+00 : f32
    %173 = vector.broadcast %cst_56 : f32 to vector<8x128xf32>
    %174 = arith.addf %173, %172 : vector<8x128xf32>
    %175 = arith.divf %173, %174 : vector<8x128xf32>
    %176 = vector.extract_strided_slice %159 {offsets = [0, 256], sizes = [8, 128], strides = [1, 1]} : vector<8x384xf32> to vector<8x128xf32>
    %177 = vector.extract_strided_slice %158 {offsets = [0, 256], sizes = [8, 128], strides = [1, 1]} : vector<8x384xf32> to vector<8x128xf32>
    %178 = vector.broadcast %11 : vector<1x128xf32> to vector<8x128xf32>
    %179 = arith.addf %177, %178 : vector<8x128xf32>
    %180 = arith.mulf %167, %179 : vector<8x128xf32>
    %181 = arith.addf %176, %180 : vector<8x128xf32>
    %182 = math.tanh %181 : vector<8x128xf32>
    %cst_57 = arith.constant 1.000000e+00 : f32
    %183 = vector.broadcast %cst_57 : f32 to vector<8x128xf32>
    %184 = arith.subf %183, %175 : vector<8x128xf32>
    %185 = arith.mulf %184, %182 : vector<8x128xf32>
    %186 = arith.mulf %175, %156 : vector<8x128xf32>
    %187 = arith.addf %185, %186 : vector<8x128xf32>
    %c0_58 = arith.constant 0 : index
    %c0_59 = arith.constant 0 : index
    %188 = vector.load %arg8[%c0_58, %c0_59] : memref<8x128xf32, #tpu.memory_space<vmem>>, vector<8x128xf32>
    tpu.vector_store %arg8[%c0_58, %c0_59], %187 {strides = array<i32>} : memref<8x128xf32, #tpu.memory_space<vmem>>, vector<8x128xf32>,
    %c0_60 = arith.constant 0 : index
    %c4 = arith.constant 4 : index
    %c0_61 = arith.constant 0 : index
    %189 = vector.load %arg6[%c0_60, %c4, %c0_61] : memref<8x8x128xf32, #tpu.memory_space<vmem>>, vector<8x1x128xf32>
    %190 = vector.shape_cast %189 : vector<8x1x128xf32> to vector<8x128xf32>
    %191 = vector.shape_cast %187 : vector<8x128xf32> to vector<8x1x128xf32>
    tpu.vector_store %arg6[%c0_60, %c4, %c0_61], %191 {strides = array<i32>} : memref<8x8x128xf32, #tpu.memory_space<vmem>>, vector<8x1x128xf32>,
    %c0_62 = arith.constant 0 : index
    %c0_63 = arith.constant 0 : index
    %192 = vector.load %arg8[%c0_62, %c0_63] : memref<8x128xf32, #tpu.memory_space<vmem>>, vector<8x128xf32>
    %193 = arith.truncf %192 : vector<8x128xf32> to vector<8x128xbf16>
    %cst_64 = arith.constant dense<0.000000e+00> : vector<8x384xf32>
    %194 = tpu.matmul %193, %10, %cst_64 {dimension_numbers = #tpu.dot_dimension_numbers<[1], [0], [0], [1], [0, 0, 1, 1], [], []>} : vector<8x128xbf16>, vector<128x384xbf16>, vector<8x384xf32> -> vector<8x384xf32>
    %195 = vector.extract_strided_slice %9 {offsets = [40, 0], sizes = [8, 384], strides = [1, 1]} : vector<64x384xf32> to vector<8x384xf32>
    %196 = vector.extract_strided_slice %195 {offsets = [0, 0], sizes = [8, 128], strides = [1, 1]} : vector<8x384xf32> to vector<8x128xf32>
    %197 = vector.extract_strided_slice %194 {offsets = [0, 0], sizes = [8, 128], strides = [1, 1]} : vector<8x384xf32> to vector<8x128xf32>
    %198 = arith.addf %196, %197 : vector<8x128xf32>
    %199 = arith.negf %198 : vector<8x128xf32>
    %200 = math.exp %199 : vector<8x128xf32>
    %cst_65 = arith.constant 1.000000e+00 : f32
    %201 = vector.broadcast %cst_65 : f32 to vector<8x128xf32>
    %202 = arith.addf %201, %200 : vector<8x128xf32>
    %203 = arith.divf %201, %202 : vector<8x128xf32>
    %204 = vector.extract_strided_slice %195 {offsets = [0, 128], sizes = [8, 128], strides = [1, 1]} : vector<8x384xf32> to vector<8x128xf32>
    %205 = vector.extract_strided_slice %194 {offsets = [0, 128], sizes = [8, 128], strides = [1, 1]} : vector<8x384xf32> to vector<8x128xf32>
    %206 = arith.addf %204, %205 : vector<8x128xf32>
    %207 = arith.negf %206 : vector<8x128xf32>
    %208 = math.exp %207 : vector<8x128xf32>
    %cst_66 = arith.constant 1.000000e+00 : f32
    %209 = vector.broadcast %cst_66 : f32 to vector<8x128xf32>
    %210 = arith.addf %209, %208 : vector<8x128xf32>
    %211 = arith.divf %209, %210 : vector<8x128xf32>
    %212 = vector.extract_strided_slice %195 {offsets = [0, 256], sizes = [8, 128], strides = [1, 1]} : vector<8x384xf32> to vector<8x128xf32>
    %213 = vector.extract_strided_slice %194 {offsets = [0, 256], sizes = [8, 128], strides = [1, 1]} : vector<8x384xf32> to vector<8x128xf32>
    %214 = vector.broadcast %11 : vector<1x128xf32> to vector<8x128xf32>
    %215 = arith.addf %213, %214 : vector<8x128xf32>
    %216 = arith.mulf %203, %215 : vector<8x128xf32>
    %217 = arith.addf %212, %216 : vector<8x128xf32>
    %218 = math.tanh %217 : vector<8x128xf32>
    %cst_67 = arith.constant 1.000000e+00 : f32
    %219 = vector.broadcast %cst_67 : f32 to vector<8x128xf32>
    %220 = arith.subf %219, %211 : vector<8x128xf32>
    %221 = arith.mulf %220, %218 : vector<8x128xf32>
    %222 = arith.mulf %211, %192 : vector<8x128xf32>
    %223 = arith.addf %221, %222 : vector<8x128xf32>
    %c0_68 = arith.constant 0 : index
    %c0_69 = arith.constant 0 : index
    %224 = vector.load %arg8[%c0_68, %c0_69] : memref<8x128xf32, #tpu.memory_space<vmem>>, vector<8x128xf32>
    tpu.vector_store %arg8[%c0_68, %c0_69], %223 {strides = array<i32>} : memref<8x128xf32, #tpu.memory_space<vmem>>, vector<8x128xf32>,
    %c0_70 = arith.constant 0 : index
    %c5 = arith.constant 5 : index
    %c0_71 = arith.constant 0 : index
    %225 = vector.load %arg6[%c0_70, %c5, %c0_71] : memref<8x8x128xf32, #tpu.memory_space<vmem>>, vector<8x1x128xf32>
    %226 = vector.shape_cast %225 : vector<8x1x128xf32> to vector<8x128xf32>
    %227 = vector.shape_cast %223 : vector<8x128xf32> to vector<8x1x128xf32>
    tpu.vector_store %arg6[%c0_70, %c5, %c0_71], %227 {strides = array<i32>} : memref<8x8x128xf32, #tpu.memory_space<vmem>>, vector<8x1x128xf32>,
    %c0_72 = arith.constant 0 : index
    %c0_73 = arith.constant 0 : index
    %228 = vector.load %arg8[%c0_72, %c0_73] : memref<8x128xf32, #tpu.memory_space<vmem>>, vector<8x128xf32>
    %229 = arith.truncf %228 : vector<8x128xf32> to vector<8x128xbf16>
    %cst_74 = arith.constant dense<0.000000e+00> : vector<8x384xf32>
    %230 = tpu.matmul %229, %10, %cst_74 {dimension_numbers = #tpu.dot_dimension_numbers<[1], [0], [0], [1], [0, 0, 1, 1], [], []>} : vector<8x128xbf16>, vector<128x384xbf16>, vector<8x384xf32> -> vector<8x384xf32>
    %231 = vector.extract_strided_slice %9 {offsets = [48, 0], sizes = [8, 384], strides = [1, 1]} : vector<64x384xf32> to vector<8x384xf32>
    %232 = vector.extract_strided_slice %231 {offsets = [0, 0], sizes = [8, 128], strides = [1, 1]} : vector<8x384xf32> to vector<8x128xf32>
    %233 = vector.extract_strided_slice %230 {offsets = [0, 0], sizes = [8, 128], strides = [1, 1]} : vector<8x384xf32> to vector<8x128xf32>
    %234 = arith.addf %232, %233 : vector<8x128xf32>
    %235 = arith.negf %234 : vector<8x128xf32>
    %236 = math.exp %235 : vector<8x128xf32>
    %cst_75 = arith.constant 1.000000e+00 : f32
    %237 = vector.broadcast %cst_75 : f32 to vector<8x128xf32>
    %238 = arith.addf %237, %236 : vector<8x128xf32>
    %239 = arith.divf %237, %238 : vector<8x128xf32>
    %240 = vector.extract_strided_slice %231 {offsets = [0, 128], sizes = [8, 128], strides = [1, 1]} : vector<8x384xf32> to vector<8x128xf32>
    %241 = vector.extract_strided_slice %230 {offsets = [0, 128], sizes = [8, 128], strides = [1, 1]} : vector<8x384xf32> to vector<8x128xf32>
    %242 = arith.addf %240, %241 : vector<8x128xf32>
    %243 = arith.negf %242 : vector<8x128xf32>
    %244 = math.exp %243 : vector<8x128xf32>
    %cst_76 = arith.constant 1.000000e+00 : f32
    %245 = vector.broadcast %cst_76 : f32 to vector<8x128xf32>
    %246 = arith.addf %245, %244 : vector<8x128xf32>
    %247 = arith.divf %245, %246 : vector<8x128xf32>
    %248 = vector.extract_strided_slice %231 {offsets = [0, 256], sizes = [8, 128], strides = [1, 1]} : vector<8x384xf32> to vector<8x128xf32>
    %249 = vector.extract_strided_slice %230 {offsets = [0, 256], sizes = [8, 128], strides = [1, 1]} : vector<8x384xf32> to vector<8x128xf32>
    %250 = vector.broadcast %11 : vector<1x128xf32> to vector<8x128xf32>
    %251 = arith.addf %249, %250 : vector<8x128xf32>
    %252 = arith.mulf %239, %251 : vector<8x128xf32>
    %253 = arith.addf %248, %252 : vector<8x128xf32>
    %254 = math.tanh %253 : vector<8x128xf32>
    %cst_77 = arith.constant 1.000000e+00 : f32
    %255 = vector.broadcast %cst_77 : f32 to vector<8x128xf32>
    %256 = arith.subf %255, %247 : vector<8x128xf32>
    %257 = arith.mulf %256, %254 : vector<8x128xf32>
    %258 = arith.mulf %247, %228 : vector<8x128xf32>
    %259 = arith.addf %257, %258 : vector<8x128xf32>
    %c0_78 = arith.constant 0 : index
    %c0_79 = arith.constant 0 : index
    %260 = vector.load %arg8[%c0_78, %c0_79] : memref<8x128xf32, #tpu.memory_space<vmem>>, vector<8x128xf32>
    tpu.vector_store %arg8[%c0_78, %c0_79], %259 {strides = array<i32>} : memref<8x128xf32, #tpu.memory_space<vmem>>, vector<8x128xf32>,
    %c0_80 = arith.constant 0 : index
    %c6 = arith.constant 6 : index
    %c0_81 = arith.constant 0 : index
    %261 = vector.load %arg6[%c0_80, %c6, %c0_81] : memref<8x8x128xf32, #tpu.memory_space<vmem>>, vector<8x1x128xf32>
    %262 = vector.shape_cast %261 : vector<8x1x128xf32> to vector<8x128xf32>
    %263 = vector.shape_cast %259 : vector<8x128xf32> to vector<8x1x128xf32>
    tpu.vector_store %arg6[%c0_80, %c6, %c0_81], %263 {strides = array<i32>} : memref<8x8x128xf32, #tpu.memory_space<vmem>>, vector<8x1x128xf32>,
    %c0_82 = arith.constant 0 : index
    %c0_83 = arith.constant 0 : index
    %264 = vector.load %arg8[%c0_82, %c0_83] : memref<8x128xf32, #tpu.memory_space<vmem>>, vector<8x128xf32>
    %265 = arith.truncf %264 : vector<8x128xf32> to vector<8x128xbf16>
    %cst_84 = arith.constant dense<0.000000e+00> : vector<8x384xf32>
    %266 = tpu.matmul %265, %10, %cst_84 {dimension_numbers = #tpu.dot_dimension_numbers<[1], [0], [0], [1], [0, 0, 1, 1], [], []>} : vector<8x128xbf16>, vector<128x384xbf16>, vector<8x384xf32> -> vector<8x384xf32>
    %267 = vector.extract_strided_slice %9 {offsets = [56, 0], sizes = [8, 384], strides = [1, 1]} : vector<64x384xf32> to vector<8x384xf32>
    %268 = vector.extract_strided_slice %267 {offsets = [0, 0], sizes = [8, 128], strides = [1, 1]} : vector<8x384xf32> to vector<8x128xf32>
    %269 = vector.extract_strided_slice %266 {offsets = [0, 0], sizes = [8, 128], strides = [1, 1]} : vector<8x384xf32> to vector<8x128xf32>
    %270 = arith.addf %268, %269 : vector<8x128xf32>
    %271 = arith.negf %270 : vector<8x128xf32>
    %272 = math.exp %271 : vector<8x128xf32>
    %cst_85 = arith.constant 1.000000e+00 : f32
    %273 = vector.broadcast %cst_85 : f32 to vector<8x128xf32>
    %274 = arith.addf %273, %272 : vector<8x128xf32>
    %275 = arith.divf %273, %274 : vector<8x128xf32>
    %276 = vector.extract_strided_slice %267 {offsets = [0, 128], sizes = [8, 128], strides = [1, 1]} : vector<8x384xf32> to vector<8x128xf32>
    %277 = vector.extract_strided_slice %266 {offsets = [0, 128], sizes = [8, 128], strides = [1, 1]} : vector<8x384xf32> to vector<8x128xf32>
    %278 = arith.addf %276, %277 : vector<8x128xf32>
    %279 = arith.negf %278 : vector<8x128xf32>
    %280 = math.exp %279 : vector<8x128xf32>
    %cst_86 = arith.constant 1.000000e+00 : f32
    %281 = vector.broadcast %cst_86 : f32 to vector<8x128xf32>
    %282 = arith.addf %281, %280 : vector<8x128xf32>
    %283 = arith.divf %281, %282 : vector<8x128xf32>
    %284 = vector.extract_strided_slice %267 {offsets = [0, 256], sizes = [8, 128], strides = [1, 1]} : vector<8x384xf32> to vector<8x128xf32>
    %285 = vector.extract_strided_slice %266 {offsets = [0, 256], sizes = [8, 128], strides = [1, 1]} : vector<8x384xf32> to vector<8x128xf32>
    %286 = vector.broadcast %11 : vector<1x128xf32> to vector<8x128xf32>
    %287 = arith.addf %285, %286 : vector<8x128xf32>
    %288 = arith.mulf %275, %287 : vector<8x128xf32>
    %289 = arith.addf %284, %288 : vector<8x128xf32>
    %290 = math.tanh %289 : vector<8x128xf32>
    %cst_87 = arith.constant 1.000000e+00 : f32
    %291 = vector.broadcast %cst_87 : f32 to vector<8x128xf32>
    %292 = arith.subf %291, %283 : vector<8x128xf32>
    %293 = arith.mulf %292, %290 : vector<8x128xf32>
    %294 = arith.mulf %283, %264 : vector<8x128xf32>
    %295 = arith.addf %293, %294 : vector<8x128xf32>
    %c0_88 = arith.constant 0 : index
    %c0_89 = arith.constant 0 : index
    %296 = vector.load %arg8[%c0_88, %c0_89] : memref<8x128xf32, #tpu.memory_space<vmem>>, vector<8x128xf32>
    tpu.vector_store %arg8[%c0_88, %c0_89], %295 {strides = array<i32>} : memref<8x128xf32, #tpu.memory_space<vmem>>, vector<8x128xf32>,
    %c0_90 = arith.constant 0 : index
    %c7 = arith.constant 7 : index
    %c0_91 = arith.constant 0 : index
    %297 = vector.load %arg6[%c0_90, %c7, %c0_91] : memref<8x8x128xf32, #tpu.memory_space<vmem>>, vector<8x1x128xf32>
    %298 = vector.shape_cast %297 : vector<8x1x128xf32> to vector<8x128xf32>
    %299 = vector.shape_cast %295 : vector<8x128xf32> to vector<8x1x128xf32>
    tpu.vector_store %arg6[%c0_90, %c7, %c0_91], %299 {strides = array<i32>} : memref<8x8x128xf32, #tpu.memory_space<vmem>>, vector<8x1x128xf32>,
    %c0_92 = arith.constant 0 : index
    %c0_93 = arith.constant 0 : index
    %300 = vector.load %arg8[%c0_92, %c0_93] : memref<8x128xf32, #tpu.memory_space<vmem>>, vector<8x128xf32>
    %c0_94 = arith.constant 0 : index
    %c0_95 = arith.constant 0 : index
    %301 = vector.load %arg7[%c0_94, %c0_95] : memref<8x128xf32, #tpu.memory_space<vmem>>, vector<8x128xf32>
    tpu.vector_store %arg7[%c0_94, %c0_95], %300 {strides = array<i32>} : memref<8x128xf32, #tpu.memory_space<vmem>>, vector<8x128xf32>,
    return
  }
  func.func @transform_0(%arg0: i32) -> (i32, i32, i32) {
    %c0_i32 = arith.constant 0 : i32
    %c0_i32_0 = arith.constant 0 : i32
    %c0_i32_1 = arith.constant 0 : i32
    return %arg0, %c0_i32, %c0_i32_0 : i32, i32, i32
  }
  func.func @transform_1(%arg0: i32) -> (i32, i32) {
    %c0_i32 = arith.constant 0 : i32
    %c0_i32_0 = arith.constant 0 : i32
    %c0_i32_1 = arith.constant 0 : i32
    return %c0_i32, %c0_i32_0 : i32, i32
  }
  func.func @transform_2(%arg0: i32) -> (i32, i32) {
    %c0_i32 = arith.constant 0 : i32
    %c0_i32_0 = arith.constant 0 : i32
    %c0_i32_1 = arith.constant 0 : i32
    return %c0_i32, %c0_i32_0 : i32, i32
  }
  func.func @transform_3(%arg0: i32) -> (i32, i32) {
    %c0_i32 = arith.constant 0 : i32
    %c0_i32_0 = arith.constant 0 : i32
    %c0_i32_1 = arith.constant 0 : i32
    return %c0_i32, %c0_i32_0 : i32, i32
  }
  func.func @transform_4(%arg0: i32) -> (i32, i32) {
    %c0_i32 = arith.constant 0 : i32
    %c0_i32_0 = arith.constant 0 : i32
    %c0_i32_1 = arith.constant 0 : i32
    return %c0_i32, %c0_i32_0 : i32, i32
  }
  func.func @transform_5(%arg0: i32) -> (i32, i32, i32) {
    %c0_i32 = arith.constant 0 : i32
    %c0_i32_0 = arith.constant 0 : i32
    %c0_i32_1 = arith.constant 0 : i32
    return %c0_i32, %arg0, %c0_i32_0 : i32, i32, i32
  }
  func.func @transform_6(%arg0: i32) -> (i32, i32) {
    %c0_i32 = arith.constant 0 : i32
    %c0_i32_0 = arith.constant 0 : i32
    %c0_i32_1 = arith.constant 0 : i32
    return %c0_i32, %c0_i32_0 : i32, i32
  }
}

</mosaic_0001>

<llo_original>
// kernel: tpu_custom_call.1
$region0: #{tpu_custom_call.1}
  #allocation0 [shape = 'u32[]', space=smem, size = 0x4, offset = 0x4, fixed_abs, tag = 'smem constant byte address 0x4 - core index']
  #allocation1 [shape = 'u32[144,128]{1,0:T(1,128)}', space=vmem, size = 0x12000, scoped, tag = 'internal scratch']
  #allocation2 [shape = 'f32[8,128]{1,0:T(8,128)}', space=vmem, size = 0x1000, scoped, tag = 'scratch operand']
  %s0 = inlined_call_operand.hbm [shape: bf16[16,8,128], index: 0, kind: input, shape index: {}]
  %s1 = inlined_call_operand.hbm [shape: bf16[128,384], index: 1, kind: input, shape index: {}]
  %s2 = inlined_call_operand.hbm [shape: bf16[128,384], index: 2, kind: input, shape index: {}]
  %s3 = inlined_call_operand.vmem [shape: f32[1,384], index: 3, kind: input, shape index: {}]
  %s4 = inlined_call_operand.vmem [shape: f32[1,128], index: 4, kind: input, shape index: {}]
  %s5 = inlined_call_operand.hbm [shape: f32[8,16,128], index: 5, kind: output, shape index: {0}]
  %s6 = inlined_call_operand.hbm [shape: f32[8,128], index: 6, kind: output, shape index: {1}]
  %7 = xla_tuple %s5, %s6
  %s8 = sld [smem:[#allocation0]]
  $region77: #{tpu_custom_call.1} parent=0
    _
  %s10 = ssub.s32 1, %s8
  %s11 = scalar_select 0, %s10, %s8
  $region1: #{tpu_custom_call.1} parent=0
    #allocation3 [shape = 'u8[32768]{0}', space=vmem, size = 0x8000, scoped, tag = 'input window, operand 0']
    #allocation4 [shape = 's32[2]{0}', space=sflag, size = 0x8, scoped, tag = 'scoped memory for tpu_custom_call.1']
    #allocation5 [shape = 's32[2]{0}', space=sflag, size = 0x8, scoped, tag = 'scoped memory for tpu_custom_call.1']
    #allocation6 [shape = 'u8[98304]{0}', space=vmem, size = 0x18000, scoped, tag = 'input window, operand 1, single buffered']
    #allocation7 [shape = 's32[1]{0}', space=sflag, size = 0x4, scoped, tag = 'scoped memory for tpu_custom_call.1']
    #allocation8 [shape = 'u8[98304]{0}', space=vmem, size = 0x18000, scoped, tag = 'input window, operand 2, single buffered']
    #allocation9 [shape = 'u8[65536]{0}', space=vmem, size = 0x10000, scoped, tag = 'output window, operand 0']
    #allocation10 [shape = 'u8[4096]{0}', space=vmem, size = 0x1000, scoped, tag = 'output window, operand 1, single buffered']
    #allocation11 [shape = 's32[1]{0}', space=sflag, size = 0x4, scoped, tag = 'scoped memory for tpu_custom_call.1']
    %12 = vsyncpa [#allocation4], 0
    %s13 = scalar_lea.sflag [#allocation4], 1
    %14 = vsyncpa %s13, 0
    %15 = vsyncpa [#allocation7], 0
    %16 = vsyncpa [#allocation5], 0
    %s17 = scalar_lea.sflag [#allocation5], 1
    %18 = vsyncpa %s17, 0
    %19 = vsyncpa [#allocation11], 0
    loop: start=0, step=1, limit=4
    $region2: #{tpu_custom_call.1} parent=1 // loop_pre_header
      _
    $region3: #{tpu_custom_call.1} parent=1 // loop_header
      %s21 = sphi 0, %s25
      %p22 = scmp.ge.s32.totalorder %s21, 4
      %s31 = sphi 0, %s33
      %s34 = sphi 0, %s31
      %s35 = sphi 0, %s34
      %s51 = sphi 0, %s35
      %s55 = sphi 0, %s55
      %s57 = sphi 0, %s55
      %s58 = sphi 0, %s57
      %s72 = sphi 0, %s58
      %s76 = sphi 0, %s76
      %s78 = sphi 0, %s76
      %s79 = sphi 0, %s78
      %s93 = sphi 0, %s79
      %s97 = sphi 0, %s97
      %s99 = sphi 0, %s97
      %s100 = sphi 0, %s99
      %s114 = sphi 0, %s100
      %s118 = sphi 0, %s118
      %s120 = sphi 0, %s118
      %s121 = sphi 0, %s120
      %s135 = sphi 0, %s121
      %s141 = sphi 0, %s143
      %s144 = sphi 0, %s141
      %s145 = sphi 0, %s144
      %s161 = sphi 0, %s145
      %s165 = sphi 0, %s165
      %s167 = sphi 0, %s165
      %s168 = sphi 0, %s167
      %s182 = sphi 0, %s168
    $region4: #{tpu_custom_call.1} parent=1 // loop_header_branch
      %24 = sbr.rel (%p22) target = $region8
    $region5: #{tpu_custom_call.1} parent=1 // loop_body
      %s26 = ssub.s32 %s21, 1
      %s27 = ssub.s32 %s21, 2
      %s28 = sadd.s32 %s21, 1
      %s29 = ssub.s32 %s21, %s28
      %p30 = scmp.eq.s32.totalorder %s29, 0
      %s32 = sadd.s32 %s31, 1
      %s33 = scalar_select %p30, %s31, %s32
      %p36 = pneg %p30
      %p37 = scmp.eq.s32.totalorder %s21, 1
      %p38 = por %p36, %p37
      %p39 = scmp.ne.s32.totalorder %s31, %s34
      %p40 = scmp.eq.s32.totalorder %s21, 0
      %p41 = por %p39, %p40
      %p42 = scmp.ne.s32.totalorder %s31, %s34
      %p43 = scmp.eq.s32.totalorder %s26, 1
      %p44 = por %p42, %p43
      %p45 = scmp.ne.s32.totalorder %s34, %s35
      %p46 = scmp.eq.s32.totalorder %s26, 0
      %p47 = por %p45, %p46
      %p48 = scmp.ne.s32.totalorder %s34, %s35
      %p49 = scmp.eq.s32.totalorder %s27, 1
      %p50 = por %p48, %p49
      %p52 = scmp.ne.s32.totalorder %s35, %s51
      %p53 = scmp.eq.s32.totalorder %s27, 0
      %p54 = por %p52, %p53
      %s56 = sadd.s32 %s55, 1
      %p59 = scmp.eq.s32.totalorder %s21, 1
      %p60 = scmp.ne.s32.totalorder %s55, %s57
      %p61 = scmp.eq.s32.totalorder %s21, 0
      %p62 = por %p60, %p61
      %p63 = scmp.ne.s32.totalorder %s55, %s57
      %p64 = scmp.eq.s32.totalorder %s26, 1
      %p65 = por %p63, %p64
      %p66 = scmp.ne.s32.totalorder %s57, %s58
      %p67 = scmp.eq.s32.totalorder %s26, 0
      %p68 = por %p66, %p67
      %p69 = scmp.ne.s32.totalorder %s57, %s58
      %p70 = scmp.eq.s32.totalorder %s27, 1
      %p71 = por %p69, %p70
      %p73 = scmp.ne.s32.totalorder %s58, %s72
      %p74 = scmp.eq.s32.totalorder %s27, 0
      %p75 = por %p73, %p74
      %s77 = sadd.s32 %s76, 1
      %p80 = scmp.eq.s32.totalorder %s21, 1
      %p81 = scmp.ne.s32.totalorder %s76, %s78
      %p82 = scmp.eq.s32.totalorder %s21, 0
      %p83 = por %p81, %p82
      %p84 = scmp.ne.s32.totalorder %s76, %s78
      %p85 = scmp.eq.s32.totalorder %s26, 1
      %p86 = por %p84, %p85
      %p87 = scmp.ne.s32.totalorder %s78, %s79
      %p88 = scmp.eq.s32.totalorder %s26, 0
      %p89 = por %p87, %p88
      %p90 = scmp.ne.s32.totalorder %s78, %s79
      %p91 = scmp.eq.s32.totalorder %s27, 1
      %p92 = por %p90, %p91
      %p94 = scmp.ne.s32.totalorder %s79, %s93
      %p95 = scmp.eq.s32.totalorder %s27, 0
      %p96 = por %p94, %p95
      %s98 = sadd.s32 %s97, 1
      %p101 = scmp.eq.s32.totalorder %s21, 1
      %p102 = scmp.ne.s32.totalorder %s97, %s99
      %p103 = scmp.eq.s32.totalorder %s21, 0
      %p104 = por %p102, %p103
      %p105 = scmp.ne.s32.totalorder %s97, %s99
      %p106 = scmp.eq.s32.totalorder %s26, 1
      %p107 = por %p105, %p106
      %p108 = scmp.ne.s32.totalorder %s99, %s100
      %p109 = scmp.eq.s32.totalorder %s26, 0
      %p110 = por %p108, %p109
      %p111 = scmp.ne.s32.totalorder %s99, %s100
      %p112 = scmp.eq.s32.totalorder %s27, 1
      %p113 = por %p111, %p112
      %p115 = scmp.ne.s32.totalorder %s100, %s114
      %p116 = scmp.eq.s32.totalorder %s27, 0
      %p117 = por %p115, %p116
      %s119 = sadd.s32 %s118, 1
      %p122 = scmp.eq.s32.totalorder %s21, 1
      %p123 = scmp.ne.s32.totalorder %s118, %s120
      %p124 = scmp.eq.s32.totalorder %s21, 0
      %p125 = por %p123, %p124
      %p126 = scmp.ne.s32.totalorder %s118, %s120
      %p127 = scmp.eq.s32.totalorder %s26, 1
      %p128 = por %p126, %p127
      %p129 = scmp.ne.s32.totalorder %s120, %s121
      %p130 = scmp.eq.s32.totalorder %s26, 0
      %p131 = por %p129, %p130
      %p132 = scmp.ne.s32.totalorder %s120, %s121
      %p133 = scmp.eq.s32.totalorder %s27, 1
      %p134 = por %p132, %p133
      %p136 = scmp.ne.s32.totalorder %s121, %s135
      %p137 = scmp.eq.s32.totalorder %s27, 0
      %p138 = por %p136, %p137
      %s139 = ssub.s32 %s21, %s28
      %p140 = scmp.eq.s32.totalorder %s139, 0
      %s142 = sadd.s32 %s141, 1
      %s143 = scalar_select %p140, %s141, %s142
      %p146 = pneg %p140
      %p147 = scmp.eq.s32.totalorder %s21, 1
      %p148 = por %p146, %p147
      %p149 = scmp.ne.s32.totalorder %s141, %s144
      %p150 = scmp.eq.s32.totalorder %s21, 0
      %p151 = por %p149, %p150
      %p152 = scmp.ne.s32.totalorder %s141, %s144
      %p153 = scmp.eq.s32.totalorder %s26, 1
      %p154 = por %p152, %p153
      %p155 = scmp.ne.s32.totalorder %s144, %s145
      %p156 = scmp.eq.s32.totalorder %s26, 0
      %p157 = por %p155, %p156
      %p158 = scmp.ne.s32.totalorder %s144, %s145
      %p159 = scmp.eq.s32.totalorder %s27, 1
      %p160 = por %p158, %p159
      %p162 = scmp.ne.s32.totalorder %s145, %s161
      %p163 = scmp.eq.s32.totalorder %s27, 0
      %p164 = por %p162, %p163
      %s166 = sadd.s32 %s165, 1
      %p169 = scmp.eq.s32.totalorder %s21, 1
      %p170 = scmp.ne.s32.totalorder %s165, %s167
      %p171 = scmp.eq.s32.totalorder %s21, 0
      %p172 = por %p170, %p171
      %p173 = scmp.ne.s32.totalorder %s165, %s167
      %p174 = scmp.eq.s32.totalorder %s26, 1
      %p175 = por %p173, %p174
      %p176 = scmp.ne.s32.totalorder %s167, %s168
      %p177 = scmp.eq.s32.totalorder %s26, 0
      %p178 = por %p176, %p177
      %p179 = scmp.ne.s32.totalorder %s167, %s168
      %p180 = scmp.eq.s32.totalorder %s27, 1
      %p181 = por %p179, %p180
      %p183 = scmp.ne.s32.totalorder %s168, %s182
      %p184 = scmp.eq.s32.totalorder %s27, 0
      %p185 = por %p183, %p184
      %p186 = scmp.le.s32.totalorder 1, %s21
      %p187 = scmp.lt.s32.totalorder %s21, 3
      %p188 = pnand %p186, %p187
      %p189 = pneg %p188
      // Predicated region
      $region9: #{tpu_custom_call.1} parent=5 // pred_check
        _
      $region10: #{tpu_custom_call.1} parent=5 // pred_check_branch
        %191 = sbr.rel (%p188) target = $region12
      $region11: #{tpu_custom_call.1} parent=5 // pred_region
        %s192 = ssub.s32 %s21, 1
        // Predicated region
        $region13: #{tpu_custom_call.1} parent=11 // pred_check
          %p193 = pneg %p68
        $region14: #{tpu_custom_call.1} parent=11 // pred_check_branch
          %195 = sbr.rel (%p193) target = $region16
        $region15: #{tpu_custom_call.1} parent=11 // pred_region
          %s197 = ssub.s32 3072, 3072
          %198 = vsyncadd [#allocation7], %s197
          %s199 = sshll.u32 [#allocation6], 4
          %s200 = int_to_ptr.vmem [resolvable:$true] %s199
          %205 = dma.hbm_to_vmem [thread:$0]  %s1, 3072, %s200, [#allocation7], 192, 192, 12
        $region16: #{tpu_custom_call.1} parent=11 // pred_fallthru
          _
        // Predicated region
        $region17: #{tpu_custom_call.1} parent=11 // pred_check
          %p206 = pneg %p89
        $region18: #{tpu_custom_call.1} parent=11 // pred_check_branch
          %208 = sbr.rel (%p206) target = $region20
        $region19: #{tpu_custom_call.1} parent=11 // pred_region
          %s210 = ssub.s32 3072, 3072
          %211 = vsyncadd [#allocation7], %s210
          %s212 = sshll.u32 [#allocation8], 4
          %s213 = int_to_ptr.vmem [resolvable:$true] %s212
          %218 = dma.hbm_to_vmem [thread:$0]  %s2, 3072, %s213, [#allocation7], 192, 192, 12
        $region20: #{tpu_custom_call.1} parent=11 // pred_fallthru
          _
        // Predicated region
        $region21: #{tpu_custom_call.1} parent=11 // pred_check
          %p219 = pneg %p110
        $region22: #{tpu_custom_call.1} parent=11 // pred_check_branch
          %221 = sbr.rel (%p219) target = $region24
        $region23: #{tpu_custom_call.1} parent=11 // pred_region
          _
        $region24: #{tpu_custom_call.1} parent=11 // pred_fallthru
          _
        // Predicated region
        $region25: #{tpu_custom_call.1} parent=11 // pred_check
          %p222 = pneg %p131
        $region26: #{tpu_custom_call.1} parent=11 // pred_check_branch
          %224 = sbr.rel (%p222) target = $region28
        $region27: #{tpu_custom_call.1} parent=11 // pred_region
          _
        $region28: #{tpu_custom_call.1} parent=11 // pred_fallthru
          _
      $region12: #{tpu_custom_call.1} parent=5 // pred_fallthru
        _
      %p225 = scmp.lt.s32.totalorder %s21, 2
      // Predicated region
      $region29: #{tpu_custom_call.1} parent=5 // pred_check
        %p226 = pneg %p225
      $region30: #{tpu_custom_call.1} parent=5 // pred_check_branch
        %228 = sbr.rel (%p226) target = $region32
      $region31: #{tpu_custom_call.1} parent=5 // pred_region
        // Predicated region
        $region33: #{tpu_custom_call.1} parent=31 // pred_check
          %p229 = pneg %p41
        $region34: #{tpu_custom_call.1} parent=31 // pred_check_branch
          %231 = sbr.rel (%p229) target = $region36
        $region35: #{tpu_custom_call.1} parent=31 // pred_region
          %s232 = sand.u32 %s31, 1
          %s233 = scalar_lea.sflag [#allocation4], %s232
          %s234 = sand.u32 %s31, 1
          %s235 = smul.addr %s234, 32
          %s236 = scalar_lea.vmem [#allocation3], %s235
          %s237 = smul.u32 8, %s21
          %s239 = ssub.s32 512, 512
          %240 = vsyncadd %s233, %s239
          %s241 = smul.addr %s237, 64
          %s242 = scalar_lea.hbm %s0, %s241
          %s243 = sshll.u32 %s236, 4
          %s244 = int_to_ptr.vmem [resolvable:$true] %s243
          %249 = dma.hbm_to_vmem [thread:$0]  %s242, 512, %s244, %s233, 64, 64, 4
        $region36: #{tpu_custom_call.1} parent=31 // pred_fallthru
          _
      $region32: #{tpu_custom_call.1} parent=5 // pred_fallthru
        _
      %p250 = scmp.le.s32.totalorder 1, %s21
      %p251 = scmp.lt.s32.totalorder %s21, 3
      %p252 = pnand %p250, %p251
      %p253 = pneg %p252
      // Predicated region
      $region37: #{tpu_custom_call.1} parent=5 // pred_check
        _
      $region38: #{tpu_custom_call.1} parent=5 // pred_check_branch
        %255 = sbr.rel (%p252) target = $region40
      $region39: #{tpu_custom_call.1} parent=5 // pred_region
        %s256 = ssub.s32 %s21, 1
        %s257 = sand.u32 %s34, 1
        %s258 = scalar_lea.sflag [#allocation4], %s257
        %s259 = sand.u32 %s34, 1
        %s260 = smul.addr %s259, 32
        %s261 = scalar_lea.vmem [#allocation3], %s260
        // Predicated region
        $region41: #{tpu_custom_call.1} parent=39 // pred_check
          %p262 = pneg %p47
        $region42: #{tpu_custom_call.1} parent=39 // pred_check_branch
          %264 = sbr.rel (%p262) target = $region44
        $region43: #{tpu_custom_call.1} parent=39 // pred_region
          %265 = dma.done %s258, 512
        $region44: #{tpu_custom_call.1} parent=39 // pred_fallthru
          _
        // Predicated region
        $region45: #{tpu_custom_call.1} parent=39 // pred_check
          %p266 = pneg %p68
        $region46: #{tpu_custom_call.1} parent=39 // pred_check_branch
          %268 = sbr.rel (%p266) target = $region48
        $region47: #{tpu_custom_call.1} parent=39 // pred_region
          %269 = dma.done [#allocation7], 3072
        $region48: #{tpu_custom_call.1} parent=39 // pred_fallthru
          _
        // Predicated region
        $region49: #{tpu_custom_call.1} parent=39 // pred_check
          %p270 = pneg %p89
        $region50: #{tpu_custom_call.1} parent=39 // pred_check_branch
          %272 = sbr.rel (%p270) target = $region52
        $region51: #{tpu_custom_call.1} parent=39 // pred_region
          %273 = dma.done [#allocation7], 3072
        $region52: #{tpu_custom_call.1} parent=39 // pred_fallthru
          _
        %s274 = sand.u32 %s34, 1
        %s275 = scalar_lea.sflag [#allocation4], %s274
        %s276 = sand.u32 %s34, 1
        %s277 = smul.addr %s276, 32
        %s278 = scalar_lea.vmem [#allocation3], %s277
        %p279 = pneg %p47
        %p280 = pneg %p44
        %p281 = pneg %p68
        %p282 = pneg %p65
        %p283 = pneg %p89
        %p284 = pneg %p86
        %p285 = pneg %p110
        %p286 = pneg %p107
        %p287 = pneg %p131
        %p288 = pneg %p128
        %p289 = pneg %p157
        %p290 = pneg %p154
        %s291 = sand.u32 %s144, 1
        %s292 = scalar_lea.sflag [#allocation5], %s291
        %s293 = sand.u32 %s144, 1
        %s294 = smul.addr %s293, 64
        %s295 = scalar_lea.vmem [#allocation9], %s294
        %p296 = pneg %p178
        %p297 = pneg %p175
        %s298 = smul.u32 8, %s26
        %p300 = scmp.eq.s32.totalorder %s26, 0
        // Predicated region
        $region53: #{tpu_custom_call.1} parent=39 // pred_check
          %p301 = pneg %p300
        $region54: #{tpu_custom_call.1} parent=39 // pred_check_branch
          %303 = sbr.rel (%p301) target = $region56
        $region55: #{tpu_custom_call.1} parent=39 // pred_region
          %304 = vst [vmem:[#allocation2] sm:$0xff] 0.0
        $region56: #{tpu_custom_call.1} parent=39 // pred_fallthru
          _
        %v305 = vld [vmem:[%s261] sm:$0xf]
        %v306 = vld [vmem:[%s261 + $0x4] sm:$0xf]
        %v307 = vld [vmem:[%s261 + $0x8] sm:$0xf]
        %v308 = vld [vmem:[%s261 + $0xc] sm:$0xf]
        %v309 = vld [vmem:[%s261 + $0x10] sm:$0xf]
        %v310 = vld [vmem:[%s261 + $0x14] sm:$0xf]
        %v311 = vld [vmem:[%s261 + $0x18] sm:$0xf]
        %v312 = vld [vmem:[%s261 + $0x1c] sm:$0xf]
        %v313 = vld [vmem:[#allocation6] sm:$0xff]
        %v314 = vld [vmem:[#allocation6 + $0x8] sm:$0xf]
        %v315 = vld [vmem:[#allocation6 + $0xc] sm:$0xff]
        %v316 = vld [vmem:[#allocation6 + $0x14] sm:$0xf]
        %v317 = vld [vmem:[#allocation6 + $0x18] sm:$0xff]
        %v318 = vld [vmem:[#allocation6 + $0x20] sm:$0xf]
        %v319 = vld [vmem:[#allocation6 + $0x24] sm:$0xff]
        %v320 = vld [vmem:[#allocation6 + $0x2c] sm:$0xf]
        %v321 = vld [vmem:[#allocation6 + $0x30] sm:$0xff]
        %v322 = vld [vmem:[#allocation6 + $0x38] sm:$0xf]
        %v323 = vld [vmem:[#allocation6 + $0x3c] sm:$0xff]
        %v324 = vld [vmem:[#allocation6 + $0x44] sm:$0xf]
        %v325 = vld [vmem:[#allocation6 + $0x48] sm:$0xff]
        %v326 = vld [vmem:[#allocation6 + $0x50] sm:$0xf]
        %v327 = vld [vmem:[#allocation6 + $0x54] sm:$0xff]
        %v328 = vld [vmem:[#allocation6 + $0x5c] sm:$0xf]
        %v329 = vld [vmem:[#allocation6 + $0x60] sm:$0xff]
        %v330 = vld [vmem:[#allocation6 + $0x68] sm:$0xf]
        %v331 = vld [vmem:[#allocation6 + $0x6c] sm:$0xff]
        %v332 = vld [vmem:[#allocation6 + $0x74] sm:$0xf]
        %v333 = vld [vmem:[#allocation6 + $0x78] sm:$0xff]
        %v334 = vld [vmem:[#allocation6 + $0x80] sm:$0xf]
        %v335 = vld [vmem:[#allocation6 + $0x84] sm:$0xff]
        %v336 = vld [vmem:[#allocation6 + $0x8c] sm:$0xf]
        %v337 = vld [vmem:[#allocation6 + $0x90] sm:$0xff]
        %v338 = vld [vmem:[#allocation6 + $0x98] sm:$0xf]
        %v339 = vld [vmem:[#allocation6 + $0x9c] sm:$0xff]
        %v340 = vld [vmem:[#allocation6 + $0xa4] sm:$0xf]
        %v341 = vld [vmem:[#allocation6 + $0xa8] sm:$0xff]
        %v342 = vld [vmem:[#allocation6 + $0xb0] sm:$0xf]
        %v343 = vld [vmem:[#allocation6 + $0xb4] sm:$0xff]
        %v344 = vld [vmem:[#allocation6 + $0xbc] sm:$0xf]
        %v345 = vld [vmem:[%s3] sm:$0x7]
        %v347 = vlaneseq
        %v348 = vshrl.u32 %v347, 7
        %v349 = vsub.s32 0, %v348
        %v350 = vrot.slane %v345, %v349
        %v351 = vlaneseq
        %v352 = vshrl.u32 %v351, 7
        %v353 = vsub.s32 1, %v352
        %v354 = vrot.slane %v345, %v353
        %v355 = vlaneseq
        %v356 = vshrl.u32 %v355, 7
        %v357 = vsub.s32 2, %v356
        %v358 = vrot.slane %v345, %v357
        %v370 = vunpack.c.l.b16 %v305
        %v371 = vunpack.c.l.b16 %v306
        %v372 = vunpack.c.l.b16 %v307
        %v373 = vunpack.c.l.b16 %v308
        %v374 = vunpack.c.l.b16 %v309
        %v375 = vunpack.c.l.b16 %v310
        %v376 = vunpack.c.l.b16 %v311
        %v377 = vunpack.c.l.b16 %v312
        %v378 = vpack.c.b16 %v371, %v370
        %v379 = vpack.c.b16 %v373, %v372
        %v380 = vpack.c.b16 %v375, %v374
        %v381 = vpack.c.b16 %v377, %v376
        %v418 = vunpack.c.l.b16 %v313
        %v419 = vunpack.c.h.b16 %v313
        %v420 = vunpack.c.l.b16 %v314
        %v421 = vunpack.c.l.b16 %v315
        %v422 = vunpack.c.h.b16 %v315
        %v423 = vunpack.c.l.b16 %v316
        %v424 = vunpack.c.l.b16 %v317
        %v425 = vunpack.c.h.b16 %v317
        %v426 = vunpack.c.l.b16 %v318
        %v427 = vunpack.c.l.b16 %v319
        %v428 = vunpack.c.h.b16 %v319
        %v429 = vunpack.c.l.b16 %v320
        %v430 = vunpack.c.l.b16 %v321
        %v431 = vunpack.c.h.b16 %v321
        %v432 = vunpack.c.l.b16 %v322
        %v433 = vunpack.c.l.b16 %v323
        %v434 = vunpack.c.h.b16 %v323
        %v435 = vunpack.c.l.b16 %v324
        %v436 = vunpack.c.l.b16 %v325
        %v437 = vunpack.c.h.b16 %v325
        %v438 = vunpack.c.l.b16 %v326
        %v439 = vunpack.c.l.b16 %v327
        %v440 = vunpack.c.h.b16 %v327
        %v441 = vunpack.c.l.b16 %v328
        %v442 = vunpack.c.l.b16 %v329
        %v443 = vunpack.c.h.b16 %v329
        %v444 = vunpack.c.l.b16 %v330
        %v445 = vunpack.c.l.b16 %v331
        %v446 = vunpack.c.h.b16 %v331
        %v447 = vunpack.c.l.b16 %v332
        %v448 = vunpack.c.l.b16 %v333
        %v449 = vunpack.c.h.b16 %v333
        %v450 = vunpack.c.l.b16 %v334
        %v451 = vunpack.c.l.b16 %v335
        %v452 = vunpack.c.h.b16 %v335
        %v453 = vunpack.c.l.b16 %v336
        %v454 = vunpack.c.l.b16 %v337
        %v455 = vunpack.c.h.b16 %v337
        %v456 = vunpack.c.l.b16 %v338
        %v457 = vunpack.c.l.b16 %v339
        %v458 = vunpack.c.h.b16 %v339
        %v459 = vunpack.c.l.b16 %v340
        %v460 = vunpack.c.l.b16 %v341
        %v461 = vunpack.c.h.b16 %v341
        %v462 = vunpack.c.l.b16 %v342
        %v463 = vunpack.c.l.b16 %v343
        %v464 = vunpack.c.h.b16 %v343
        %v465 = vunpack.c.l.b16 %v344
        %v466 = vpack.c.b16 %v421, %v418
        %v467 = vpack.c.b16 %v422, %v419
        %v468 = vpack.c.b16 %v423, %v420
        %v469 = vpack.c.b16 %v427, %v424
        %v470 = vpack.c.b16 %v428, %v425
        %v471 = vpack.c.b16 %v429, %v426
        %v472 = vpack.c.b16 %v433, %v430
        %v473 = vpack.c.b16 %v434, %v431
        %v474 = vpack.c.b16 %v435, %v432
        %v475 = vpack.c.b16 %v439, %v436
        %v476 = vpack.c.b16 %v440, %v437
        %v477 = vpack.c.b16 %v441, %v438
        %v478 = vpack.c.b16 %v445, %v442
        %v479 = vpack.c.b16 %v446, %v443
        %v480 = vpack.c.b16 %v447, %v444
        %v481 = vpack.c.b16 %v451, %v448
        %v482 = vpack.c.b16 %v452, %v449
        %v483 = vpack.c.b16 %v453, %v450
        %v484 = vpack.c.b16 %v457, %v454
        %v485 = vpack.c.b16 %v458, %v455
        %v486 = vpack.c.b16 %v459, %v456
        %v487 = vpack.c.b16 %v463, %v460
        %v488 = vpack.c.b16 %v464, %v461
        %v489 = vpack.c.b16 %v465, %v462
        %514 = vmatprep.subr.bf16.mxu0 %v488
        %515 = vmatpush1.bf16.msra.mxu0 %v487
        %516 = vmatprep.subr.bf16.mxu0 %v485
        %517 = vmatpush1.bf16.msra.mxu0 %v484
        %518 = vmatprep.subr.bf16.mxu0 %v482
        %519 = vmatpush1.bf16.msra.mxu0 %v481
        %520 = vmatprep.subr.bf16.mxu0 %v479
        %521 = vmatpush1.bf16.msra.mxu0 %v478
        %522 = vmatprep.subr.bf16.mxu0 %v476
        %523 = vmatpush1.bf16.msra.mxu0 %v475
        %524 = vmatprep.subr.bf16.mxu0 %v473
        %525 = vmatpush1.bf16.msra.mxu0 %v472
        %526 = vmatprep.subr.bf16.mxu0 %v470
        %527 = vmatpush1.bf16.msra.mxu0 %v469
        %528 = vmatprep.subr.bf16.mxu0 %v467
        %529 = vmatpush1.bf16.msra.mxu0 %v466
        %530 = vmatprep.subr.bf16.mxu0 0
        %531 = vmatpush2.bf16.msra.mxu0 0
        %532 = vmatprep.subr.bf16.mxu0 0
        %533 = vmatpush2.bf16.msra.mxu0 0
        %534 = vmatprep.subr.bf16.mxu0 0
        %535 = vmatpush2.bf16.msra.mxu0 0
        %536 = vmatprep.subr.bf16.mxu0 0
        %537 = vmatpush2.bf16.msra.mxu0 0
        %538 = vmatprep.subr.bf16.mxu0 0
        %539 = vmatpush2.bf16.msra.mxu0 0
        %540 = vmatprep.subr.bf16.mxu0 0
        %541 = vmatpush2.bf16.msra.mxu0 0
        %542 = vmatprep.subr.bf16.mxu0 0
        %543 = vmatpush2.bf16.msra.mxu0 0
        %544 = vmatprep.subr.bf16.mxu0 0
        %545 = vmatpush2.bf16.msra.mxu0 0
        %546 = vmatprep.mubr.bf16.mxu0 0
        %547 = vmatmul.mubr.bf16.gmra.mxu0 %v378
        %v548 = vpop.f32.mrf.mxu0
        %v549 = vadd.f32 %v350, %v548
        %v550 = vpop.f32.mrf.mxu0
        %v551 = vadd.f32 %v354, %v550
        %v552 = vpop.f32.mrf.mxu0
        %v553 = vadd.f32 %v350, %v552
        %v554 = vpop.f32.mrf.mxu0
        %v555 = vadd.f32 %v354, %v554
        %556 = vmatprep.mubr.bf16.mxu0 0
        %557 = vmatmul.mubr.bf16.gmra.mxu0 %v379
        %v558 = vpop.f32.mrf.mxu0
        %v559 = vadd.f32 %v350, %v558
        %v560 = vpop.f32.mrf.mxu0
        %v561 = vadd.f32 %v354, %v560
        %v562 = vpop.f32.mrf.mxu0
        %v563 = vadd.f32 %v350, %v562
        %v564 = vpop.f32.mrf.mxu0
        %v565 = vadd.f32 %v354, %v564
        %566 = vmatprep.mubr.bf16.mxu0 0
        %567 = vmatmul.mubr.bf16.gmra.mxu0 %v380
        %v568 = vpop.f32.mrf.mxu0
        %v569 = vadd.f32 %v350, %v568
        %v570 = vpop.f32.mrf.mxu0
        %v571 = vadd.f32 %v354, %v570
        %v572 = vpop.f32.mrf.mxu0
        %v573 = vadd.f32 %v350, %v572
        %v574 = vpop.f32.mrf.mxu0
        %v575 = vadd.f32 %v354, %v574
        %576 = vmatprep.mubr.bf16.mxu0 0
        %577 = vmatmul.mubr.bf16.gmra.mxu0 %v381
        %v578 = vpop.f32.mrf.mxu0
        %v579 = vadd.f32 %v350, %v578
        %v580 = vpop.f32.mrf.mxu0
        %v581 = vadd.f32 %v354, %v580
        %v582 = vpop.f32.mrf.mxu0
        %v583 = vadd.f32 %v350, %v582
        %v584 = vpop.f32.mrf.mxu0
        %v585 = vadd.f32 %v354, %v584
        %586 = vdwg.mxu0
        %587 = vmatprep.subr.bf16.mxu0 0
        %588 = vmatpush1.bf16.msra.mxu0 %v489
        %589 = vmatprep.subr.bf16.mxu0 0
        %590 = vmatpush1.bf16.msra.mxu0 %v486
        %591 = vmatprep.subr.bf16.mxu0 0
        %592 = vmatpush1.bf16.msra.mxu0 %v483
        %593 = vmatprep.subr.bf16.mxu0 0
        %594 = vmatpush1.bf16.msra.mxu0 %v480
        %595 = vmatprep.subr.bf16.mxu0 0
        %596 = vmatpush1.bf16.msra.mxu0 %v477
        %597 = vmatprep.subr.bf16.mxu0 0
        %598 = vmatpush1.bf16.msra.mxu0 %v474
        %599 = vmatprep.subr.bf16.mxu0 0
        %600 = vmatpush1.bf16.msra.mxu0 %v471
        %601 = vmatprep.subr.bf16.mxu0 0
        %602 = vmatpush1.bf16.msra.mxu0 %v468
        %603 = vmatprep.subr.bf16.mxu0 0
        %604 = vmatpush2.bf16.msra.mxu0 0
        %605 = vmatprep.subr.bf16.mxu0 0
        %606 = vmatpush2.bf16.msra.mxu0 0
        %607 = vmatprep.subr.bf16.mxu0 0
        %608 = vmatpush2.bf16.msra.mxu0 0
        %609 = vmatprep.subr.bf16.mxu0 0
        %610 = vmatpush2.bf16.msra.mxu0 0
        %611 = vmatprep.subr.bf16.mxu0 0
        %612 = vmatpush2.bf16.msra.mxu0 0
        %613 = vmatprep.subr.bf16.mxu0 0
        %614 = vmatpush2.bf16.msra.mxu0 0
        %615 = vmatprep.subr.bf16.mxu0 0
        %616 = vmatpush2.bf16.msra.mxu0 0
        %617 = vmatprep.subr.bf16.mxu0 0
        %618 = vmatpush2.bf16.msra.mxu0 0
        %619 = vmatprep.mubr.bf16.mxu0 0
        %620 = vmatmul.mubr.bf16.gmra.mxu0 %v378
        %v621 = vpop.f32.mrf.mxu0
        %v622 = vadd.f32 %v358, %v621
        %v623 = vpop.f32.mrf.mxu0
        %v624 = vpop.f32.mrf.mxu0
        %v625 = vadd.f32 %v358, %v624
        %v626 = vpop.f32.mrf.mxu0
        %627 = vmatprep.mubr.bf16.mxu0 0
        %628 = vmatmul.mubr.bf16.gmra.mxu0 %v379
        %v629 = vpop.f32.mrf.mxu0
        %v630 = vadd.f32 %v358, %v629
        %v631 = vpop.f32.mrf.mxu0
        %v632 = vpop.f32.mrf.mxu0
        %v633 = vadd.f32 %v358, %v632
        %v634 = vpop.f32.mrf.mxu0
        %635 = vmatprep.mubr.bf16.mxu0 0
        %636 = vmatmul.mubr.bf16.gmra.mxu0 %v380
        %v637 = vpop.f32.mrf.mxu0
        %v638 = vadd.f32 %v358, %v637
        %v639 = vpop.f32.mrf.mxu0
        %v640 = vpop.f32.mrf.mxu0
        %v641 = vadd.f32 %v358, %v640
        %v642 = vpop.f32.mrf.mxu0
        %643 = vmatprep.mubr.bf16.mxu0 0
        %644 = vmatmul.mubr.bf16.gmra.mxu0 %v381
        %v645 = vpop.f32.mrf.mxu0
        %v646 = vadd.f32 %v358, %v645
        %v647 = vpop.f32.mrf.mxu0
        %v648 = vpop.f32.mrf.mxu0
        %v649 = vadd.f32 %v358, %v648
        %v650 = vpop.f32.mrf.mxu0
        %651 = vdwg.mxu0
        %v652 = vld [vmem:[#allocation8] sm:$0xff]
        %v653 = vld [vmem:[#allocation8 + $0x8] sm:$0xf]
        %v654 = vld [vmem:[#allocation8 + $0xc] sm:$0xff]
        %v655 = vld [vmem:[#allocation8 + $0x14] sm:$0xf]
        %v656 = vld [vmem:[#allocation8 + $0x18] sm:$0xff]
        %v657 = vld [vmem:[#allocation8 + $0x20] sm:$0xf]
        %v658 = vld [vmem:[#allocation8 + $0x24] sm:$0xff]
        %v659 = vld [vmem:[#allocation8 + $0x2c] sm:$0xf]
        %v660 = vld [vmem:[#allocation8 + $0x30] sm:$0xff]
        %v661 = vld [vmem:[#allocation8 + $0x38] sm:$0xf]
        %v662 = vld [vmem:[#allocation8 + $0x3c] sm:$0xff]
        %v663 = vld [vmem:[#allocation8 + $0x44] sm:$0xf]
        %v664 = vld [vmem:[#allocation8 + $0x48] sm:$0xff]
        %v665 = vld [vmem:[#allocation8 + $0x50] sm:$0xf]
        %v666 = vld [vmem:[#allocation8 + $0x54] sm:$0xff]
        %v667 = vld [vmem:[#allocation8 + $0x5c] sm:$0xf]
        %v668 = vld [vmem:[#allocation8 + $0x60] sm:$0xff]
        %v669 = vld [vmem:[#allocation8 + $0x68] sm:$0xf]
        %v670 = vld [vmem:[#allocation8 + $0x6c] sm:$0xff]
        %v671 = vld [vmem:[#allocation8 + $0x74] sm:$0xf]
        %v672 = vld [vmem:[#allocation8 + $0x78] sm:$0xff]
        %v673 = vld [vmem:[#allocation8 + $0x80] sm:$0xf]
        %v674 = vld [vmem:[#allocation8 + $0x84] sm:$0xff]
        %v675 = vld [vmem:[#allocation8 + $0x8c] sm:$0xf]
        %v676 = vld [vmem:[#allocation8 + $0x90] sm:$0xff]
        %v677 = vld [vmem:[#allocation8 + $0x98] sm:$0xf]
        %v678 = vld [vmem:[#allocation8 + $0x9c] sm:$0xff]
        %v679 = vld [vmem:[#allocation8 + $0xa4] sm:$0xf]
        %v680 = vld [vmem:[#allocation8 + $0xa8] sm:$0xff]
        %v681 = vld [vmem:[#allocation8 + $0xb0] sm:$0xf]
        %v682 = vld [vmem:[#allocation8 + $0xb4] sm:$0xff]
        %v683 = vld [vmem:[#allocation8 + $0xbc] sm:$0xf]
        %v684 = vld [vmem:[%s4] sm:$0x1]
        %v685 = vld [vmem:[#allocation2] sm:$0xff]
        %v686 = vpack.c.bf16 %v685, %v685
        %v719 = vunpack.c.l.b16 %v652
        %v720 = vunpack.c.h.b16 %v652
        %v721 = vunpack.c.l.b16 %v653
        %v722 = vunpack.c.l.b16 %v654
        %v723 = vunpack.c.h.b16 %v654
        %v724 = vunpack.c.l.b16 %v655
        %v725 = vunpack.c.l.b16 %v656
        %v726 = vunpack.c.h.b16 %v656
        %v727 = vunpack.c.l.b16 %v657
        %v728 = vunpack.c.l.b16 %v658
        %v729 = vunpack.c.h.b16 %v658
        %v730 = vunpack.c.l.b16 %v659
        %v731 = vunpack.c.l.b16 %v660
        %v732 = vunpack.c.h.b16 %v660
        %v733 = vunpack.c.l.b16 %v661
        %v734 = vunpack.c.l.b16 %v662
        %v735 = vunpack.c.h.b16 %v662
        %v736 = vunpack.c.l.b16 %v663
        %v737 = vunpack.c.l.b16 %v664
        %v738 = vunpack.c.h.b16 %v664
        %v739 = vunpack.c.l.b16 %v665
        %v740 = vunpack.c.l.b16 %v666
        %v741 = vunpack.c.h.b16 %v666
        %v742 = vunpack.c.l.b16 %v667
        %v743 = vunpack.c.l.b16 %v668
        %v744 = vunpack.c.h.b16 %v668
        %v745 = vunpack.c.l.b16 %v669
        %v746 = vunpack.c.l.b16 %v670
        %v747 = vunpack.c.h.b16 %v670
        %v748 = vunpack.c.l.b16 %v671
        %v749 = vunpack.c.l.b16 %v672
        %v750 = vunpack.c.h.b16 %v672
        %v751 = vunpack.c.l.b16 %v673
        %v752 = vunpack.c.l.b16 %v674
        %v753 = vunpack.c.h.b16 %v674
        %v754 = vunpack.c.l.b16 %v675
        %v755 = vunpack.c.l.b16 %v676
        %v756 = vunpack.c.h.b16 %v676
        %v757 = vunpack.c.l.b16 %v677
        %v758 = vunpack.c.l.b16 %v678
        %v759 = vunpack.c.h.b16 %v678
        %v760 = vunpack.c.l.b16 %v679
        %v761 = vunpack.c.l.b16 %v680
        %v762 = vunpack.c.h.b16 %v680
        %v763 = vunpack.c.l.b16 %v681
        %v764 = vunpack.c.l.b16 %v682
        %v765 = vunpack.c.h.b16 %v682
        %v766 = vunpack.c.l.b16 %v683
        %v767 = vpack.c.b16 %v722, %v719
        %v768 = vpack.c.b16 %v723, %v720
        %v769 = vpack.c.b16 %v724, %v721
        %v770 = vpack.c.b16 %v728, %v725
        %v771 = vpack.c.b16 %v729, %v726
        %v772 = vpack.c.b16 %v730, %v727
        %v773 = vpack.c.b16 %v734, %v731
        %v774 = vpack.c.b16 %v735, %v732
        %v775 = vpack.c.b16 %v736, %v733
        %v776 = vpack.c.b16 %v740, %v737
        %v777 = vpack.c.b16 %v741, %v738
        %v778 = vpack.c.b16 %v742, %v739
        %v779 = vpack.c.b16 %v746, %v743
        %v780 = vpack.c.b16 %v747, %v744
        %v781 = vpack.c.b16 %v748, %v745
        %v782 = vpack.c.b16 %v752, %v749
        %v783 = vpack.c.b16 %v753, %v750
        %v784 = vpack.c.b16 %v754, %v751
        %v785 = vpack.c.b16 %v758, %v755
        %v786 = vpack.c.b16 %v759, %v756
        %v787 = vpack.c.b16 %v760, %v757
        %v788 = vpack.c.b16 %v764, %v761
        %v789 = vpack.c.b16 %v765, %v762
        %v790 = vpack.c.b16 %v766, %v763
        %815 = vmatprep.subr.bf16.mxu0 %v789
        %816 = vmatpush1.bf16.msra.mxu0 %v788
        %817 = vmatprep.subr.bf16.mxu0 %v786
        %818 = vmatpush1.bf16.msra.mxu0 %v785
        %819 = vmatprep.subr.bf16.mxu0 %v783
        %820 = vmatpush1.bf16.msra.mxu0 %v782
        %821 = vmatprep.subr.bf16.mxu0 %v780
        %822 = vmatpush1.bf16.msra.mxu0 %v779
        %823 = vmatprep.subr.bf16.mxu0 %v777
        %824 = vmatpush1.bf16.msra.mxu0 %v776
        %825 = vmatprep.subr.bf16.mxu0 %v774
        %826 = vmatpush1.bf16.msra.mxu0 %v773
        %827 = vmatprep.subr.bf16.mxu0 %v771
        %828 = vmatpush1.bf16.msra.mxu0 %v770
        %829 = vmatprep.subr.bf16.mxu0 %v768
        %830 = vmatpush1.bf16.msra.mxu0 %v767
        %831 = vmatprep.subr.bf16.mxu0 0
        %832 = vmatpush2.bf16.msra.mxu0 0
        %833 = vmatprep.subr.bf16.mxu0 0
        %834 = vmatpush2.bf16.msra.mxu0 0
        %835 = vmatprep.subr.bf16.mxu0 0
        %836 = vmatpush2.bf16.msra.mxu0 0
        %837 = vmatprep.subr.bf16.mxu0 0
        %838 = vmatpush2.bf16.msra.mxu0 0
        %839 = vmatprep.subr.bf16.mxu0 0
        %840 = vmatpush2.bf16.msra.mxu0 0
        %841 = vmatprep.subr.bf16.mxu0 0
        %842 = vmatpush2.bf16.msra.mxu0 0
        %843 = vmatprep.subr.bf16.mxu0 0
        %844 = vmatpush2.bf16.msra.mxu0 0
        %845 = vmatprep.subr.bf16.mxu0 0
        %846 = vmatpush2.bf16.msra.mxu0 0
        %847 = vmatprep.mubr.bf16.mxu0 0
        %848 = vmatmul.mubr.bf16.gmra.mxu0 %v686
        %v849 = vpop.f32.mrf.mxu0
        %v850 = vadd.f32 0.0, %v849
        %v851 = vpop.f32.mrf.mxu0
        %v852 = vadd.f32 0.0, %v851
        %v853 = vpop.f32.mrf.mxu0
        %v854 = vpop.f32.mrf.mxu0
        %855 = vdwg.mxu0
        %856 = vmatprep.subr.bf16.mxu0 0
        %857 = vmatpush1.bf16.msra.mxu0 %v790
        %858 = vmatprep.subr.bf16.mxu0 0
        %859 = vmatpush1.bf16.msra.mxu0 %v787
        %860 = vmatprep.subr.bf16.mxu0 0
        %861 = vmatpush1.bf16.msra.mxu0 %v784
        %862 = vmatprep.subr.bf16.mxu0 0
        %863 = vmatpush1.bf16.msra.mxu0 %v781
        %864 = vmatprep.subr.bf16.mxu0 0
        %865 = vmatpush1.bf16.msra.mxu0 %v778
        %866 = vmatprep.subr.bf16.mxu0 0
        %867 = vmatpush1.bf16.msra.mxu0 %v775
        %868 = vmatprep.subr.bf16.mxu0 0
        %869 = vmatpush1.bf16.msra.mxu0 %v772
        %870 = vmatprep.subr.bf16.mxu0 0
        %871 = vmatpush1.bf16.msra.mxu0 %v769
        %872 = vmatprep.subr.bf16.mxu0 0
        %873 = vmatpush2.bf16.msra.mxu0 0
        %874 = vmatprep.subr.bf16.mxu0 0
        %875 = vmatpush2.bf16.msra.mxu0 0
        %876 = vmatprep.subr.bf16.mxu0 0
        %877 = vmatpush2.bf16.msra.mxu0 0
        %878 = vmatprep.subr.bf16.mxu0 0
        %879 = vmatpush2.bf16.msra.mxu0 0
        %880 = vmatprep.subr.bf16.mxu0 0
        %881 = vmatpush2.bf16.msra.mxu0 0
        %882 = vmatprep.subr.bf16.mxu0 0
        %883 = vmatpush2.bf16.msra.mxu0 0
        %884 = vmatprep.subr.bf16.mxu0 0
        %885 = vmatpush2.bf16.msra.mxu0 0
        %886 = vmatprep.subr.bf16.mxu0 0
        %887 = vmatpush2.bf16.msra.mxu0 0
        %888 = vmatprep.mubr.bf16.mxu0 0
        %889 = vmatmul.mubr.bf16.gmra.mxu0 %v686
        %v890 = vpop.f32.mrf.mxu0
        %v891 = vadd.f32 0.0, %v890
        %v892 = vpop.f32.mrf.mxu0
        %v893 = vpop.f32.mrf.mxu0
        %v894 = vpop.f32.mrf.mxu0
        %895 = vdwg.mxu0
        %v896 = vadd.f32 %v549, %v850
        %v897 = vxor.u32 %v896, 2147483648
        %v898 = vmul.f32 %v897, 1.442695
        %v899 = vpow.pop %v898
        %v900 = vadd.f32 %v899, 1.0
        %v901 = vrcp.pop %v900
        %v902 = vmul.f32 1.0, %v901
        %v903 = vadd.f32 %v551, %v852
        %v904 = vxor.u32 %v903, 2147483648
        %v905 = vmul.f32 %v904, 1.442695
        %v906 = vpow.pop %v905
        %v907 = vadd.f32 %v906, 1.0
        %v908 = vrcp.pop %v907
        %v909 = vmul.f32 1.0, %v908
        %v911 = vlaneseq
        %v912 = vshrl.u32 %v911, 7
        %v913 = vsub.s32 0, %v912
        %v914 = vrot.slane %v684, %v913
        %v916 = vadd.f32 %v891, %v914
        %v917 = vmul.f32 %v902, %v916
        %v918 = vadd.f32 %v622, %v917
        %v919 = vtanh.pop %v918
        %v920 = vsub.f32 1.0, %v909
        %v921 = vmul.f32 %v920, %v919
        %v922 = vmul.f32 %v909, %v685
        %v923 = vadd.f32 %v921, %v922
        %924 = vst [vmem:[#allocation2] sm:$0xff] %v923
        %v926 = vcombine.high %v923, %v923
        %v928 = vunpack.c.l.s4 1966171168
        %v929 = vunpack.c.0.s8 %v928
        %v930 = vlaneseq
        %v931 = vshrl.u32 %v930, 7
        %v932 = vsub.s32 %v929, %v931
        %v933 = vrot.slane %v923, %v932
        %v935 = vunpack.c.l.s4 1966171168
        %v936 = vunpack.c.0.s8 %v935
        %v937 = vlaneseq
        %v938 = vshrl.u32 %v937, 7
        %v939 = vsub.s32 %v936, %v938
        %v940 = vrot.slane %v926, %v939
        %v941 = vcombine.high %v933, %v933
        %v942 = vcombine.high %v940, %v940
        %v944 = vunpack.c.l.s4 1966171168
        %v945 = vunpack.c.0.s8 %v944
        %v946 = vlaneseq
        %v947 = vshrl.u32 %v946, 7
        %v948 = vsub.s32 %v945, %v947
        %v949 = vrot.slane %v933, %v948
        %v951 = vunpack.c.l.s4 1966171168
        %v952 = vunpack.c.0.s8 %v951
        %v953 = vlaneseq
        %v954 = vshrl.u32 %v953, 7
        %v955 = vsub.s32 %v952, %v954
        %v956 = vrot.slane %v940, %v955
        %v958 = vunpack.c.l.s4 1966171168
        %v959 = vunpack.c.0.s8 %v958
        %v960 = vlaneseq
        %v961 = vshrl.u32 %v960, 7
        %v962 = vsub.s32 %v959, %v961
        %v963 = vrot.slane %v941, %v962
        %v965 = vunpack.c.l.s4 1966171168
        %v966 = vunpack.c.0.s8 %v965
        %v967 = vlaneseq
        %v968 = vshrl.u32 %v967, 7
        %v969 = vsub.s32 %v966, %v968
        %v970 = vrot.slane %v942, %v969
        %v971 = vcombine.high %v949, %v949
        %v972 = vcombine.high %v956, %v956
        %v973 = vcombine.high %v963, %v963
        %v974 = vcombine.high %v970, %v970
        %983 = vst [vmem:[%s295] sm:$0x1] %v949
        %984 = vst [vmem:[%s295 + $0x8] sm:$0x1] %v963
        %985 = vst [vmem:[%s295 + $0x10] sm:$0x1] %v971
        %986 = vst [vmem:[%s295 + $0x18] sm:$0x1] %v973
        %987 = vst [vmem:[%s295 + $0x20] sm:$0x1] %v956
        %988 = vst [vmem:[%s295 + $0x28] sm:$0x1] %v970
        %989 = vst [vmem:[%s295 + $0x30] sm:$0x1] %v972
        %990 = vst [vmem:[%s295 + $0x38] sm:$0x1] %v974
        %v991 = vld [vmem:[#allocation2] sm:$0xff]
        %v992 = vpack.c.bf16 %v991, %v991
        %993 = vmatprep.subr.bf16.mxu0 %v789
        %994 = vmatpush1.bf16.msra.mxu0 %v788
        %995 = vmatprep.subr.bf16.mxu0 %v786
        %996 = vmatpush1.bf16.msra.mxu0 %v785
        %997 = vmatprep.subr.bf16.mxu0 %v783
        %998 = vmatpush1.bf16.msra.mxu0 %v782
        %999 = vmatprep.subr.bf16.mxu0 %v780
        %1000 = vmatpush1.bf16.msra.mxu0 %v779
        %1001 = vmatprep.subr.bf16.mxu0 %v777
        %1002 = vmatpush1.bf16.msra.mxu0 %v776
        %1003 = vmatprep.subr.bf16.mxu0 %v774
        %1004 = vmatpush1.bf16.msra.mxu0 %v773
        %1005 = vmatprep.subr.bf16.mxu0 %v771
        %1006 = vmatpush1.bf16.msra.mxu0 %v770
        %1007 = vmatprep.subr.bf16.mxu0 %v768
        %1008 = vmatpush1.bf16.msra.mxu0 %v767
        %1009 = vmatprep.subr.bf16.mxu0 0
        %1010 = vmatpush2.bf16.msra.mxu0 0
        %1011 = vmatprep.subr.bf16.mxu0 0
        %1012 = vmatpush2.bf16.msra.mxu0 0
        %1013 = vmatprep.subr.bf16.mxu0 0
        %1014 = vmatpush2.bf16.msra.mxu0 0
        %1015 = vmatprep.subr.bf16.mxu0 0
        %1016 = vmatpush2.bf16.msra.mxu0 0
        %1017 = vmatprep.subr.bf16.mxu0 0
        %1018 = vmatpush2.bf16.msra.mxu0 0
        %1019 = vmatprep.subr.bf16.mxu0 0
        %1020 = vmatpush2.bf16.msra.mxu0 0
        %1021 = vmatprep.subr.bf16.mxu0 0
        %1022 = vmatpush2.bf16.msra.mxu0 0
        %1023 = vmatprep.subr.bf16.mxu0 0
        %1024 = vmatpush2.bf16.msra.mxu0 0
        %1025 = vmatprep.mubr.bf16.mxu0 0
        %1026 = vmatmul.mubr.bf16.gmra.mxu0 %v992
        %v1027 = vpop.f32.mrf.mxu0
        %v1028 = vadd.f32 0.0, %v1027
        %v1029 = vpop.f32.mrf.mxu0
        %v1030 = vadd.f32 0.0, %v1029
        %v1031 = vpop.f32.mrf.mxu0
        %v1032 = vpop.f32.mrf.mxu0
        %1033 = vdwg.mxu0
        %1034 = vmatprep.subr.bf16.mxu0 0
        %1035 = vmatpush1.bf16.msra.mxu0 %v790
        %1036 = vmatprep.subr.bf16.mxu0 0
        %1037 = vmatpush1.bf16.msra.mxu0 %v787
        %1038 = vmatprep.subr.bf16.mxu0 0
        %1039 = vmatpush1.bf16.msra.mxu0 %v784
        %1040 = vmatprep.subr.bf16.mxu0 0
        %1041 = vmatpush1.bf16.msra.mxu0 %v781
        %1042 = vmatprep.subr.bf16.mxu0 0
        %1043 = vmatpush1.bf16.msra.mxu0 %v778
        %1044 = vmatprep.subr.bf16.mxu0 0
        %1045 = vmatpush1.bf16.msra.mxu0 %v775
        %1046 = vmatprep.subr.bf16.mxu0 0
        %1047 = vmatpush1.bf16.msra.mxu0 %v772
        %1048 = vmatprep.subr.bf16.mxu0 0
        %1049 = vmatpush1.bf16.msra.mxu0 %v769
        %1050 = vmatprep.subr.bf16.mxu0 0
        %1051 = vmatpush2.bf16.msra.mxu0 0
        %1052 = vmatprep.subr.bf16.mxu0 0
        %1053 = vmatpush2.bf16.msra.mxu0 0
        %1054 = vmatprep.subr.bf16.mxu0 0
        %1055 = vmatpush2.bf16.msra.mxu0 0
        %1056 = vmatprep.subr.bf16.mxu0 0
        %1057 = vmatpush2.bf16.msra.mxu0 0
        %1058 = vmatprep.subr.bf16.mxu0 0
        %1059 = vmatpush2.bf16.msra.mxu0 0
        %1060 = vmatprep.subr.bf16.mxu0 0
        %1061 = vmatpush2.bf16.msra.mxu0 0
        %1062 = vmatprep.subr.bf16.mxu0 0
        %1063 = vmatpush2.bf16.msra.mxu0 0
        %1064 = vmatprep.subr.bf16.mxu0 0
        %1065 = vmatpush2.bf16.msra.mxu0 0
        %1066 = vmatprep.mubr.bf16.mxu0 0
        %1067 = vmatmul.mubr.bf16.gmra.mxu0 %v992
        %v1068 = vpop.f32.mrf.mxu0
        %v1069 = vadd.f32 0.0, %v1068
        %v1070 = vpop.f32.mrf.mxu0
        %v1071 = vpop.f32.mrf.mxu0
        %v1072 = vpop.f32.mrf.mxu0
        %1073 = vdwg.mxu0
        %v1074 = vadd.f32 %v553, %v1028
        %v1075 = vxor.u32 %v1074, 2147483648
        %v1076 = vmul.f32 %v1075, 1.442695
        %v1077 = vpow.pop %v1076
        %v1078 = vadd.f32 %v1077, 1.0
        %v1079 = vrcp.pop %v1078
        %v1080 = vmul.f32 1.0, %v1079
        %v1081 = vadd.f32 %v555, %v1030
        %v1082 = vxor.u32 %v1081, 2147483648
        %v1083 = vmul.f32 %v1082, 1.442695
        %v1084 = vpow.pop %v1083
        %v1085 = vadd.f32 %v1084, 1.0
        %v1086 = vrcp.pop %v1085
        %v1087 = vmul.f32 1.0, %v1086
        %v1088 = vadd.f32 %v1069, %v914
        %v1089 = vmul.f32 %v1080, %v1088
        %v1090 = vadd.f32 %v625, %v1089
        %v1091 = vtanh.pop %v1090
        %v1092 = vsub.f32 1.0, %v1087
        %v1093 = vmul.f32 %v1092, %v1091
        %v1094 = vmul.f32 %v1087, %v991
        %v1095 = vadd.f32 %v1093, %v1094
        %1096 = vst [vmem:[#allocation2] sm:$0xff] %v1095
        %v1098 = vcombine.high %v1095, %v1095
        %v1100 = vunpack.c.l.s4 1966171168
        %v1101 = vunpack.c.0.s8 %v1100
        %v1102 = vlaneseq
        %v1103 = vshrl.u32 %v1102, 7
        %v1104 = vsub.s32 %v1101, %v1103
        %v1105 = vrot.slane %v1095, %v1104
        %v1107 = vunpack.c.l.s4 1966171168
        %v1108 = vunpack.c.0.s8 %v1107
        %v1109 = vlaneseq
        %v1110 = vshrl.u32 %v1109, 7
        %v1111 = vsub.s32 %v1108, %v1110
        %v1112 = vrot.slane %v1098, %v1111
        %v1113 = vcombine.high %v1105, %v1105
        %v1114 = vcombine.high %v1112, %v1112
        %v1116 = vunpack.c.l.s4 1966171168
        %v1117 = vunpack.c.0.s8 %v1116
        %v1118 = vlaneseq
        %v1119 = vshrl.u32 %v1118, 7
        %v1120 = vsub.s32 %v1117, %v1119
        %v1121 = vrot.slane %v1105, %v1120
        %v1123 = vunpack.c.l.s4 1966171168
        %v1124 = vunpack.c.0.s8 %v1123
        %v1125 = vlaneseq
        %v1126 = vshrl.u32 %v1125, 7
        %v1127 = vsub.s32 %v1124, %v1126
        %v1128 = vrot.slane %v1112, %v1127
        %v1130 = vunpack.c.l.s4 1966171168
        %v1131 = vunpack.c.0.s8 %v1130
        %v1132 = vlaneseq
        %v1133 = vshrl.u32 %v1132, 7
        %v1134 = vsub.s32 %v1131, %v1133
        %v1135 = vrot.slane %v1113, %v1134
        %v1137 = vunpack.c.l.s4 1966171168
        %v1138 = vunpack.c.0.s8 %v1137
        %v1139 = vlaneseq
        %v1140 = vshrl.u32 %v1139, 7
        %v1141 = vsub.s32 %v1138, %v1140
        %v1142 = vrot.slane %v1114, %v1141
        %v1143 = vcombine.high %v1121, %v1121
        %v1144 = vcombine.high %v1128, %v1128
        %v1145 = vcombine.high %v1135, %v1135
        %v1146 = vcombine.high %v1142, %v1142
        %1155 = vst [vmem:[%s295 + $0x1] sm:$0x1] %v1121
        %1156 = vst [vmem:[%s295 + $0x9] sm:$0x1] %v1135
        %1157 = vst [vmem:[%s295 + $0x11] sm:$0x1] %v1143
        %1158 = vst [vmem:[%s295 + $0x19] sm:$0x1] %v1145
        %1159 = vst [vmem:[%s295 + $0x21] sm:$0x1] %v1128
        %1160 = vst [vmem:[%s295 + $0x29] sm:$0x1] %v1142
        %1161 = vst [vmem:[%s295 + $0x31] sm:$0x1] %v1144
        %1162 = vst [vmem:[%s295 + $0x39] sm:$0x1] %v1146
        %v1163 = vld [vmem:[#allocation2] sm:$0xff]
        %v1164 = vpack.c.bf16 %v1163, %v1163
        %1165 = vmatprep.subr.bf16.mxu0 %v789
        %1166 = vmatpush1.bf16.msra.mxu0 %v788
        %1167 = vmatprep.subr.bf16.mxu0 %v786
        %1168 = vmatpush1.bf16.msra.mxu0 %v785
        %1169 = vmatprep.subr.bf16.mxu0 %v783
        %1170 = vmatpush1.bf16.msra.mxu0 %v782
        %1171 = vmatprep.subr.bf16.mxu0 %v780
        %1172 = vmatpush1.bf16.msra.mxu0 %v779
        %1173 = vmatprep.subr.bf16.mxu0 %v777
        %1174 = vmatpush1.bf16.msra.mxu0 %v776
        %1175 = vmatprep.subr.bf16.mxu0 %v774
        %1176 = vmatpush1.bf16.msra.mxu0 %v773
        %1177 = vmatprep.subr.bf16.mxu0 %v771
        %1178 = vmatpush1.bf16.msra.mxu0 %v770
        %1179 = vmatprep.subr.bf16.mxu0 %v768
        %1180 = vmatpush1.bf16.msra.mxu0 %v767
        %1181 = vmatprep.subr.bf16.mxu0 0
        %1182 = vmatpush2.bf16.msra.mxu0 0
        %1183 = vmatprep.subr.bf16.mxu0 0
        %1184 = vmatpush2.bf16.msra.mxu0 0
        %1185 = vmatprep.subr.bf16.mxu0 0
        %1186 = vmatpush2.bf16.msra.mxu0 0
        %1187 = vmatprep.subr.bf16.mxu0 0
        %1188 = vmatpush2.bf16.msra.mxu0 0
        %1189 = vmatprep.subr.bf16.mxu0 0
        %1190 = vmatpush2.bf16.msra.mxu0 0
        %1191 = vmatprep.subr.bf16.mxu0 0
        %1192 = vmatpush2.bf16.msra.mxu0 0
        %1193 = vmatprep.subr.bf16.mxu0 0
        %1194 = vmatpush2.bf16.msra.mxu0 0
        %1195 = vmatprep.subr.bf16.mxu0 0
        %1196 = vmatpush2.bf16.msra.mxu0 0
        %1197 = vmatprep.mubr.bf16.mxu0 0
        %1198 = vmatmul.mubr.bf16.gmra.mxu0 %v1164
        %v1199 = vpop.f32.mrf.mxu0
        %v1200 = vadd.f32 0.0, %v1199
        %v1201 = vpop.f32.mrf.mxu0
        %v1202 = vadd.f32 0.0, %v1201
        %v1203 = vpop.f32.mrf.mxu0
        %v1204 = vpop.f32.mrf.mxu0
        %1205 = vdwg.mxu0
        %1206 = vmatprep.subr.bf16.mxu0 0
        %1207 = vmatpush1.bf16.msra.mxu0 %v790
        %1208 = vmatprep.subr.bf16.mxu0 0
        %1209 = vmatpush1.bf16.msra.mxu0 %v787
        %1210 = vmatprep.subr.bf16.mxu0 0
        %1211 = vmatpush1.bf16.msra.mxu0 %v784
        %1212 = vmatprep.subr.bf16.mxu0 0
        %1213 = vmatpush1.bf16.msra.mxu0 %v781
        %1214 = vmatprep.subr.bf16.mxu0 0
        %1215 = vmatpush1.bf16.msra.mxu0 %v778
        %1216 = vmatprep.subr.bf16.mxu0 0
        %1217 = vmatpush1.bf16.msra.mxu0 %v775
        %1218 = vmatprep.subr.bf16.mxu0 0
        %1219 = vmatpush1.bf16.msra.mxu0 %v772
        %1220 = vmatprep.subr.bf16.mxu0 0
        %1221 = vmatpush1.bf16.msra.mxu0 %v769
        %1222 = vmatprep.subr.bf16.mxu0 0
        %1223 = vmatpush2.bf16.msra.mxu0 0
        %1224 = vmatprep.subr.bf16.mxu0 0
        %1225 = vmatpush2.bf16.msra.mxu0 0
        %1226 = vmatprep.subr.bf16.mxu0 0
        %1227 = vmatpush2.bf16.msra.mxu0 0
        %1228 = vmatprep.subr.bf16.mxu0 0
        %1229 = vmatpush2.bf16.msra.mxu0 0
        %1230 = vmatprep.subr.bf16.mxu0 0
        %1231 = vmatpush2.bf16.msra.mxu0 0
        %1232 = vmatprep.subr.bf16.mxu0 0
        %1233 = vmatpush2.bf16.msra.mxu0 0
        %1234 = vmatprep.subr.bf16.mxu0 0
        %1235 = vmatpush2.bf16.msra.mxu0 0
        %1236 = vmatprep.subr.bf16.mxu0 0
        %1237 = vmatpush2.bf16.msra.mxu0 0
        %1238 = vmatprep.mubr.bf16.mxu0 0
        %1239 = vmatmul.mubr.bf16.gmra.mxu0 %v1164
        %v1240 = vpop.f32.mrf.mxu0
        %v1241 = vadd.f32 0.0, %v1240
        %v1242 = vpop.f32.mrf.mxu0
        %v1243 = vpop.f32.mrf.mxu0
        %v1244 = vpop.f32.mrf.mxu0
        %1245 = vdwg.mxu0
        %v1246 = vadd.f32 %v559, %v1200
        %v1247 = vxor.u32 %v1246, 2147483648
        %v1248 = vmul.f32 %v1247, 1.442695
        %v1249 = vpow.pop %v1248
        %v1250 = vadd.f32 %v1249, 1.0
        %v1251 = vrcp.pop %v1250
        %v1252 = vmul.f32 1.0, %v1251
        %v1253 = vadd.f32 %v561, %v1202
        %v1254 = vxor.u32 %v1253, 2147483648
        %v1255 = vmul.f32 %v1254, 1.442695
        %v1256 = vpow.pop %v1255
        %v1257 = vadd.f32 %v1256, 1.0
        %v1258 = vrcp.pop %v1257
        %v1259 = vmul.f32 1.0, %v1258
        %v1260 = vadd.f32 %v1241, %v914
        %v1261 = vmul.f32 %v1252, %v1260
        %v1262 = vadd.f32 %v630, %v1261
        %v1263 = vtanh.pop %v1262
        %v1264 = vsub.f32 1.0, %v1259
        %v1265 = vmul.f32 %v1264, %v1263
        %v1266 = vmul.f32 %v1259, %v1163
        %v1267 = vadd.f32 %v1265, %v1266
        %1268 = vst [vmem:[#allocation2] sm:$0xff] %v1267
        %v1270 = vcombine.high %v1267, %v1267
        %v1272 = vunpack.c.l.s4 1966171168
        %v1273 = vunpack.c.0.s8 %v1272
        %v1274 = vlaneseq
        %v1275 = vshrl.u32 %v1274, 7
        %v1276 = vsub.s32 %v1273, %v1275
        %v1277 = vrot.slane %v1267, %v1276
        %v1279 = vunpack.c.l.s4 1966171168
        %v1280 = vunpack.c.0.s8 %v1279
        %v1281 = vlaneseq
        %v1282 = vshrl.u32 %v1281, 7
        %v1283 = vsub.s32 %v1280, %v1282
        %v1284 = vrot.slane %v1270, %v1283
        %v1285 = vcombine.high %v1277, %v1277
        %v1286 = vcombine.high %v1284, %v1284
        %v1288 = vunpack.c.l.s4 1966171168
        %v1289 = vunpack.c.0.s8 %v1288
        %v1290 = vlaneseq
        %v1291 = vshrl.u32 %v1290, 7
        %v1292 = vsub.s32 %v1289, %v1291
        %v1293 = vrot.slane %v1277, %v1292
        %v1295 = vunpack.c.l.s4 1966171168
        %v1296 = vunpack.c.0.s8 %v1295
        %v1297 = vlaneseq
        %v1298 = vshrl.u32 %v1297, 7
        %v1299 = vsub.s32 %v1296, %v1298
        %v1300 = vrot.slane %v1284, %v1299
        %v1302 = vunpack.c.l.s4 1966171168
        %v1303 = vunpack.c.0.s8 %v1302
        %v1304 = vlaneseq
        %v1305 = vshrl.u32 %v1304, 7
        %v1306 = vsub.s32 %v1303, %v1305
        %v1307 = vrot.slane %v1285, %v1306
        %v1309 = vunpack.c.l.s4 1966171168
        %v1310 = vunpack.c.0.s8 %v1309
        %v1311 = vlaneseq
        %v1312 = vshrl.u32 %v1311, 7
        %v1313 = vsub.s32 %v1310, %v1312
        %v1314 = vrot.slane %v1286, %v1313
        %v1315 = vcombine.high %v1293, %v1293
        %v1316 = vcombine.high %v1300, %v1300
        %v1317 = vcombine.high %v1307, %v1307
        %v1318 = vcombine.high %v1314, %v1314
        %1327 = vst [vmem:[%s295 + $0x2] sm:$0x1] %v1293
        %1328 = vst [vmem:[%s295 + $0xa] sm:$0x1] %v1307
        %1329 = vst [vmem:[%s295 + $0x12] sm:$0x1] %v1315
        %1330 = vst [vmem:[%s295 + $0x1a] sm:$0x1] %v1317
        %1331 = vst [vmem:[%s295 + $0x22] sm:$0x1] %v1300
        %1332 = vst [vmem:[%s295 + $0x2a] sm:$0x1] %v1314
        %1333 = vst [vmem:[%s295 + $0x32] sm:$0x1] %v1316
        %1334 = vst [vmem:[%s295 + $0x3a] sm:$0x1] %v1318
        %v1335 = vld [vmem:[#allocation2] sm:$0xff]
        %v1336 = vpack.c.bf16 %v1335, %v1335
        %1337 = vmatprep.subr.bf16.mxu0 %v789
        %1338 = vmatpush1.bf16.msra.mxu0 %v788
        %1339 = vmatprep.subr.bf16.mxu0 %v786
        %1340 = vmatpush1.bf16.msra.mxu0 %v785
        %1341 = vmatprep.subr.bf16.mxu0 %v783
        %1342 = vmatpush1.bf16.msra.mxu0 %v782
        %1343 = vmatprep.subr.bf16.mxu0 %v780
        %1344 = vmatpush1.bf16.msra.mxu0 %v779
        %1345 = vmatprep.subr.bf16.mxu0 %v777
        %1346 = vmatpush1.bf16.msra.mxu0 %v776
        %1347 = vmatprep.subr.bf16.mxu0 %v774
        %1348 = vmatpush1.bf16.msra.mxu0 %v773
        %1349 = vmatprep.subr.bf16.mxu0 %v771
        %1350 = vmatpush1.bf16.msra.mxu0 %v770
        %1351 = vmatprep.subr.bf16.mxu0 %v768
        %1352 = vmatpush1.bf16.msra.mxu0 %v767
        %1353 = vmatprep.subr.bf16.mxu0 0
        %1354 = vmatpush2.bf16.msra.mxu0 0
        %1355 = vmatprep.subr.bf16.mxu0 0
        %1356 = vmatpush2.bf16.msra.mxu0 0
        %1357 = vmatprep.subr.bf16.mxu0 0
        %1358 = vmatpush2.bf16.msra.mxu0 0
        %1359 = vmatprep.subr.bf16.mxu0 0
        %1360 = vmatpush2.bf16.msra.mxu0 0
        %1361 = vmatprep.subr.bf16.mxu0 0
        %1362 = vmatpush2.bf16.msra.mxu0 0
        %1363 = vmatprep.subr.bf16.mxu0 0
        %1364 = vmatpush2.bf16.msra.mxu0 0
        %1365 = vmatprep.subr.bf16.mxu0 0
        %1366 = vmatpush2.bf16.msra.mxu0 0
        %1367 = vmatprep.subr.bf16.mxu0 0
        %1368 = vmatpush2.bf16.msra.mxu0 0
        %1369 = vmatprep.mubr.bf16.mxu0 0
        %1370 = vmatmul.mubr.bf16.gmra.mxu0 %v1336
        %v1371 = vpop.f32.mrf.mxu0
        %v1372 = vadd.f32 0.0, %v1371
        %v1373 = vpop.f32.mrf.mxu0
        %v1374 = vadd.f32 0.0, %v1373
        %v1375 = vpop.f32.mrf.mxu0
        %v1376 = vpop.f32.mrf.mxu0
        %1377 = vdwg.mxu0
        %1378 = vmatprep.subr.bf16.mxu0 0
        %1379 = vmatpush1.bf16.msra.mxu0 %v790
        %1380 = vmatprep.subr.bf16.mxu0 0
        %1381 = vmatpush1.bf16.msra.mxu0 %v787
        %1382 = vmatprep.subr.bf16.mxu0 0
        %1383 = vmatpush1.bf16.msra.mxu0 %v784
        %1384 = vmatprep.subr.bf16.mxu0 0
        %1385 = vmatpush1.bf16.msra.mxu0 %v781
        %1386 = vmatprep.subr.bf16.mxu0 0
        %1387 = vmatpush1.bf16.msra.mxu0 %v778
        %1388 = vmatprep.subr.bf16.mxu0 0
        %1389 = vmatpush1.bf16.msra.mxu0 %v775
        %1390 = vmatprep.subr.bf16.mxu0 0
        %1391 = vmatpush1.bf16.msra.mxu0 %v772
        %1392 = vmatprep.subr.bf16.mxu0 0
        %1393 = vmatpush1.bf16.msra.mxu0 %v769
        %1394 = vmatprep.subr.bf16.mxu0 0
        %1395 = vmatpush2.bf16.msra.mxu0 0
        %1396 = vmatprep.subr.bf16.mxu0 0
        %1397 = vmatpush2.bf16.msra.mxu0 0
        %1398 = vmatprep.subr.bf16.mxu0 0
        %1399 = vmatpush2.bf16.msra.mxu0 0
        %1400 = vmatprep.subr.bf16.mxu0 0
        %1401 = vmatpush2.bf16.msra.mxu0 0
        %1402 = vmatprep.subr.bf16.mxu0 0
        %1403 = vmatpush2.bf16.msra.mxu0 0
        %1404 = vmatprep.subr.bf16.mxu0 0
        %1405 = vmatpush2.bf16.msra.mxu0 0
        %1406 = vmatprep.subr.bf16.mxu0 0
        %1407 = vmatpush2.bf16.msra.mxu0 0
        %1408 = vmatprep.subr.bf16.mxu0 0
        %1409 = vmatpush2.bf16.msra.mxu0 0
        %1410 = vmatprep.mubr.bf16.mxu0 0
        %1411 = vmatmul.mubr.bf16.gmra.mxu0 %v1336
        %v1412 = vpop.f32.mrf.mxu0
        %v1413 = vadd.f32 0.0, %v1412
        %v1414 = vpop.f32.mrf.mxu0
        %v1415 = vpop.f32.mrf.mxu0
        %v1416 = vpop.f32.mrf.mxu0
        %1417 = vdwg.mxu0
        %v1418 = vadd.f32 %v563, %v1372
        %v1419 = vxor.u32 %v1418, 2147483648
        %v1420 = vmul.f32 %v1419, 1.442695
        %v1421 = vpow.pop %v1420
        %v1422 = vadd.f32 %v1421, 1.0
        %v1423 = vrcp.pop %v1422
        %v1424 = vmul.f32 1.0, %v1423
        %v1425 = vadd.f32 %v565, %v1374
        %v1426 = vxor.u32 %v1425, 2147483648
        %v1427 = vmul.f32 %v1426, 1.442695
        %v1428 = vpow.pop %v1427
        %v1429 = vadd.f32 %v1428, 1.0
        %v1430 = vrcp.pop %v1429
        %v1431 = vmul.f32 1.0, %v1430
        %v1432 = vadd.f32 %v1413, %v914
        %v1433 = vmul.f32 %v1424, %v1432
        %v1434 = vadd.f32 %v633, %v1433
        %v1435 = vtanh.pop %v1434
        %v1436 = vsub.f32 1.0, %v1431
        %v1437 = vmul.f32 %v1436, %v1435
        %v1438 = vmul.f32 %v1431, %v1335
        %v1439 = vadd.f32 %v1437, %v1438
        %1440 = vst [vmem:[#allocation2] sm:$0xff] %v1439
        %v1442 = vcombine.high %v1439, %v1439
        %v1444 = vunpack.c.l.s4 1966171168
        %v1445 = vunpack.c.0.s8 %v1444
        %v1446 = vlaneseq
        %v1447 = vshrl.u32 %v1446, 7
        %v1448 = vsub.s32 %v1445, %v1447
        %v1449 = vrot.slane %v1439, %v1448
        %v1451 = vunpack.c.l.s4 1966171168
        %v1452 = vunpack.c.0.s8 %v1451
        %v1453 = vlaneseq
        %v1454 = vshrl.u32 %v1453, 7
        %v1455 = vsub.s32 %v1452, %v1454
        %v1456 = vrot.slane %v1442, %v1455
        %v1457 = vcombine.high %v1449, %v1449
        %v1458 = vcombine.high %v1456, %v1456
        %v1460 = vunpack.c.l.s4 1966171168
        %v1461 = vunpack.c.0.s8 %v1460
        %v1462 = vlaneseq
        %v1463 = vshrl.u32 %v1462, 7
        %v1464 = vsub.s32 %v1461, %v1463
        %v1465 = vrot.slane %v1449, %v1464
        %v1467 = vunpack.c.l.s4 1966171168
        %v1468 = vunpack.c.0.s8 %v1467
        %v1469 = vlaneseq
        %v1470 = vshrl.u32 %v1469, 7
        %v1471 = vsub.s32 %v1468, %v1470
        %v1472 = vrot.slane %v1456, %v1471
        %v1474 = vunpack.c.l.s4 1966171168
        %v1475 = vunpack.c.0.s8 %v1474
        %v1476 = vlaneseq
        %v1477 = vshrl.u32 %v1476, 7
        %v1478 = vsub.s32 %v1475, %v1477
        %v1479 = vrot.slane %v1457, %v1478
        %v1481 = vunpack.c.l.s4 1966171168
        %v1482 = vunpack.c.0.s8 %v1481
        %v1483 = vlaneseq
        %v1484 = vshrl.u32 %v1483, 7
        %v1485 = vsub.s32 %v1482, %v1484
        %v1486 = vrot.slane %v1458, %v1485
        %v1487 = vcombine.high %v1465, %v1465
        %v1488 = vcombine.high %v1472, %v1472
        %v1489 = vcombine.high %v1479, %v1479
        %v1490 = vcombine.high %v1486, %v1486
        %1499 = vst [vmem:[%s295 + $0x3] sm:$0x1] %v1465
        %1500 = vst [vmem:[%s295 + $0xb] sm:$0x1] %v1479
        %1501 = vst [vmem:[%s295 + $0x13] sm:$0x1] %v1487
        %1502 = vst [vmem:[%s295 + $0x1b] sm:$0x1] %v1489
        %1503 = vst [vmem:[%s295 + $0x23] sm:$0x1] %v1472
        %1504 = vst [vmem:[%s295 + $0x2b] sm:$0x1] %v1486
        %1505 = vst [vmem:[%s295 + $0x33] sm:$0x1] %v1488
        %1506 = vst [vmem:[%s295 + $0x3b] sm:$0x1] %v1490
        %v1507 = vld [vmem:[#allocation2] sm:$0xff]
        %v1508 = vpack.c.bf16 %v1507, %v1507
        %1509 = vmatprep.subr.bf16.mxu0 %v789
        %1510 = vmatpush1.bf16.msra.mxu0 %v788
        %1511 = vmatprep.subr.bf16.mxu0 %v786
        %1512 = vmatpush1.bf16.msra.mxu0 %v785
        %1513 = vmatprep.subr.bf16.mxu0 %v783
        %1514 = vmatpush1.bf16.msra.mxu0 %v782
        %1515 = vmatprep.subr.bf16.mxu0 %v780
        %1516 = vmatpush1.bf16.msra.mxu0 %v779
        %1517 = vmatprep.subr.bf16.mxu0 %v777
        %1518 = vmatpush1.bf16.msra.mxu0 %v776
        %1519 = vmatprep.subr.bf16.mxu0 %v774
        %1520 = vmatpush1.bf16.msra.mxu0 %v773
        %1521 = vmatprep.subr.bf16.mxu0 %v771
        %1522 = vmatpush1.bf16.msra.mxu0 %v770
        %1523 = vmatprep.subr.bf16.mxu0 %v768
        %1524 = vmatpush1.bf16.msra.mxu0 %v767
        %1525 = vmatprep.subr.bf16.mxu0 0
        %1526 = vmatpush2.bf16.msra.mxu0 0
        %1527 = vmatprep.subr.bf16.mxu0 0
        %1528 = vmatpush2.bf16.msra.mxu0 0
        %1529 = vmatprep.subr.bf16.mxu0 0
        %1530 = vmatpush2.bf16.msra.mxu0 0
        %1531 = vmatprep.subr.bf16.mxu0 0
        %1532 = vmatpush2.bf16.msra.mxu0 0
        %1533 = vmatprep.subr.bf16.mxu0 0
        %1534 = vmatpush2.bf16.msra.mxu0 0
        %1535 = vmatprep.subr.bf16.mxu0 0
        %1536 = vmatpush2.bf16.msra.mxu0 0
        %1537 = vmatprep.subr.bf16.mxu0 0
        %1538 = vmatpush2.bf16.msra.mxu0 0
        %1539 = vmatprep.subr.bf16.mxu0 0
        %1540 = vmatpush2.bf16.msra.mxu0 0
        %1541 = vmatprep.mubr.bf16.mxu0 0
        %1542 = vmatmul.mubr.bf16.gmra.mxu0 %v1508
        %v1543 = vpop.f32.mrf.mxu0
        %v1544 = vadd.f32 0.0, %v1543
        %v1545 = vpop.f32.mrf.mxu0
        %v1546 = vadd.f32 0.0, %v1545
        %v1547 = vpop.f32.mrf.mxu0
        %v1548 = vpop.f32.mrf.mxu0
        %1549 = vdwg.mxu0
        %1550 = vmatprep.subr.bf16.mxu0 0
        %1551 = vmatpush1.bf16.msra.mxu0 %v790
        %1552 = vmatprep.subr.bf16.mxu0 0
        %1553 = vmatpush1.bf16.msra.mxu0 %v787
        %1554 = vmatprep.subr.bf16.mxu0 0
        %1555 = vmatpush1.bf16.msra.mxu0 %v784
        %1556 = vmatprep.subr.bf16.mxu0 0
        %1557 = vmatpush1.bf16.msra.mxu0 %v781
        %1558 = vmatprep.subr.bf16.mxu0 0
        %1559 = vmatpush1.bf16.msra.mxu0 %v778
        %1560 = vmatprep.subr.bf16.mxu0 0
        %1561 = vmatpush1.bf16.msra.mxu0 %v775
        %1562 = vmatprep.subr.bf16.mxu0 0
        %1563 = vmatpush1.bf16.msra.mxu0 %v772
        %1564 = vmatprep.subr.bf16.mxu0 0
        %1565 = vmatpush1.bf16.msra.mxu0 %v769
        %1566 = vmatprep.subr.bf16.mxu0 0
        %1567 = vmatpush2.bf16.msra.mxu0 0
        %1568 = vmatprep.subr.bf16.mxu0 0
        %1569 = vmatpush2.bf16.msra.mxu0 0
        %1570 = vmatprep.subr.bf16.mxu0 0
        %1571 = vmatpush2.bf16.msra.mxu0 0
        %1572 = vmatprep.subr.bf16.mxu0 0
        %1573 = vmatpush2.bf16.msra.mxu0 0
        %1574 = vmatprep.subr.bf16.mxu0 0
        %1575 = vmatpush2.bf16.msra.mxu0 0
        %1576 = vmatprep.subr.bf16.mxu0 0
        %1577 = vmatpush2.bf16.msra.mxu0 0
        %1578 = vmatprep.subr.bf16.mxu0 0
        %1579 = vmatpush2.bf16.msra.mxu0 0
        %1580 = vmatprep.subr.bf16.mxu0 0
        %1581 = vmatpush2.bf16.msra.mxu0 0
        %1582 = vmatprep.mubr.bf16.mxu0 0
        %1583 = vmatmul.mubr.bf16.gmra.mxu0 %v1508
        %v1584 = vpop.f32.mrf.mxu0
        %v1585 = vadd.f32 0.0, %v1584
        %v1586 = vpop.f32.mrf.mxu0
        %v1587 = vpop.f32.mrf.mxu0
        %v1588 = vpop.f32.mrf.mxu0
        %1589 = vdwg.mxu0
        %v1590 = vadd.f32 %v569, %v1544
        %v1591 = vxor.u32 %v1590, 2147483648
        %v1592 = vmul.f32 %v1591, 1.442695
        %v1593 = vpow.pop %v1592
        %v1594 = vadd.f32 %v1593, 1.0
        %v1595 = vrcp.pop %v1594
        %v1596 = vmul.f32 1.0, %v1595
        %v1597 = vadd.f32 %v571, %v1546
        %v1598 = vxor.u32 %v1597, 2147483648
        %v1599 = vmul.f32 %v1598, 1.442695
        %v1600 = vpow.pop %v1599
        %v1601 = vadd.f32 %v1600, 1.0
        %v1602 = vrcp.pop %v1601
        %v1603 = vmul.f32 1.0, %v1602
        %v1604 = vadd.f32 %v1585, %v914
        %v1605 = vmul.f32 %v1596, %v1604
        %v1606 = vadd.f32 %v638, %v1605
        %v1607 = vtanh.pop %v1606
        %v1608 = vsub.f32 1.0, %v1603
        %v1609 = vmul.f32 %v1608, %v1607
        %v1610 = vmul.f32 %v1603, %v1507
        %v1611 = vadd.f32 %v1609, %v1610
        %1612 = vst [vmem:[#allocation2] sm:$0xff] %v1611
        %v1614 = vcombine.high %v1611, %v1611
        %v1616 = vunpack.c.l.s4 1966171168
        %v1617 = vunpack.c.0.s8 %v1616
        %v1618 = vlaneseq
        %v1619 = vshrl.u32 %v1618, 7
        %v1620 = vsub.s32 %v1617, %v1619
        %v1621 = vrot.slane %v1611, %v1620
        %v1623 = vunpack.c.l.s4 1966171168
        %v1624 = vunpack.c.0.s8 %v1623
        %v1625 = vlaneseq
        %v1626 = vshrl.u32 %v1625, 7
        %v1627 = vsub.s32 %v1624, %v1626
        %v1628 = vrot.slane %v1614, %v1627
        %v1629 = vcombine.high %v1621, %v1621
        %v1630 = vcombine.high %v1628, %v1628
        %v1632 = vunpack.c.l.s4 1966171168
        %v1633 = vunpack.c.0.s8 %v1632
        %v1634 = vlaneseq
        %v1635 = vshrl.u32 %v1634, 7
        %v1636 = vsub.s32 %v1633, %v1635
        %v1637 = vrot.slane %v1621, %v1636
        %v1639 = vunpack.c.l.s4 1966171168
        %v1640 = vunpack.c.0.s8 %v1639
        %v1641 = vlaneseq
        %v1642 = vshrl.u32 %v1641, 7
        %v1643 = vsub.s32 %v1640, %v1642
        %v1644 = vrot.slane %v1628, %v1643
        %v1646 = vunpack.c.l.s4 1966171168
        %v1647 = vunpack.c.0.s8 %v1646
        %v1648 = vlaneseq
        %v1649 = vshrl.u32 %v1648, 7
        %v1650 = vsub.s32 %v1647, %v1649
        %v1651 = vrot.slane %v1629, %v1650
        %v1653 = vunpack.c.l.s4 1966171168
        %v1654 = vunpack.c.0.s8 %v1653
        %v1655 = vlaneseq
        %v1656 = vshrl.u32 %v1655, 7
        %v1657 = vsub.s32 %v1654, %v1656
        %v1658 = vrot.slane %v1630, %v1657
        %v1659 = vcombine.high %v1637, %v1637
        %v1660 = vcombine.high %v1644, %v1644
        %v1661 = vcombine.high %v1651, %v1651
        %v1662 = vcombine.high %v1658, %v1658
        %1671 = vst [vmem:[%s295 + $0x4] sm:$0x1] %v1637
        %1672 = vst [vmem:[%s295 + $0xc] sm:$0x1] %v1651
        %1673 = vst [vmem:[%s295 + $0x14] sm:$0x1] %v1659
        %1674 = vst [vmem:[%s295 + $0x1c] sm:$0x1] %v1661
        %1675 = vst [vmem:[%s295 + $0x24] sm:$0x1] %v1644
        %1676 = vst [vmem:[%s295 + $0x2c] sm:$0x1] %v1658
        %1677 = vst [vmem:[%s295 + $0x34] sm:$0x1] %v1660
        %1678 = vst [vmem:[%s295 + $0x3c] sm:$0x1] %v1662
        %v1679 = vld [vmem:[#allocation2] sm:$0xff]
        %v1680 = vpack.c.bf16 %v1679, %v1679
        %1681 = vmatprep.subr.bf16.mxu0 %v789
        %1682 = vmatpush1.bf16.msra.mxu0 %v788
        %1683 = vmatprep.subr.bf16.mxu0 %v786
        %1684 = vmatpush1.bf16.msra.mxu0 %v785
        %1685 = vmatprep.subr.bf16.mxu0 %v783
        %1686 = vmatpush1.bf16.msra.mxu0 %v782
        %1687 = vmatprep.subr.bf16.mxu0 %v780
        %1688 = vmatpush1.bf16.msra.mxu0 %v779
        %1689 = vmatprep.subr.bf16.mxu0 %v777
        %1690 = vmatpush1.bf16.msra.mxu0 %v776
        %1691 = vmatprep.subr.bf16.mxu0 %v774
        %1692 = vmatpush1.bf16.msra.mxu0 %v773
        %1693 = vmatprep.subr.bf16.mxu0 %v771
        %1694 = vmatpush1.bf16.msra.mxu0 %v770
        %1695 = vmatprep.subr.bf16.mxu0 %v768
        %1696 = vmatpush1.bf16.msra.mxu0 %v767
        %1697 = vmatprep.subr.bf16.mxu0 0
        %1698 = vmatpush2.bf16.msra.mxu0 0
        %1699 = vmatprep.subr.bf16.mxu0 0
        %1700 = vmatpush2.bf16.msra.mxu0 0
        %1701 = vmatprep.subr.bf16.mxu0 0
        %1702 = vmatpush2.bf16.msra.mxu0 0
        %1703 = vmatprep.subr.bf16.mxu0 0
        %1704 = vmatpush2.bf16.msra.mxu0 0
        %1705 = vmatprep.subr.bf16.mxu0 0
        %1706 = vmatpush2.bf16.msra.mxu0 0
        %1707 = vmatprep.subr.bf16.mxu0 0
        %1708 = vmatpush2.bf16.msra.mxu0 0
        %1709 = vmatprep.subr.bf16.mxu0 0
        %1710 = vmatpush2.bf16.msra.mxu0 0
        %1711 = vmatprep.subr.bf16.mxu0 0
        %1712 = vmatpush2.bf16.msra.mxu0 0
        %1713 = vmatprep.mubr.bf16.mxu0 0
        %1714 = vmatmul.mubr.bf16.gmra.mxu0 %v1680
        %v1715 = vpop.f32.mrf.mxu0
        %v1716 = vadd.f32 0.0, %v1715
        %v1717 = vpop.f32.mrf.mxu0
        %v1718 = vadd.f32 0.0, %v1717
        %v1719 = vpop.f32.mrf.mxu0
        %v1720 = vpop.f32.mrf.mxu0
        %1721 = vdwg.mxu0
        %1722 = vmatprep.subr.bf16.mxu0 0
        %1723 = vmatpush1.bf16.msra.mxu0 %v790
        %1724 = vmatprep.subr.bf16.mxu0 0
        %1725 = vmatpush1.bf16.msra.mxu0 %v787
        %1726 = vmatprep.subr.bf16.mxu0 0
        %1727 = vmatpush1.bf16.msra.mxu0 %v784
        %1728 = vmatprep.subr.bf16.mxu0 0
        %1729 = vmatpush1.bf16.msra.mxu0 %v781
        %1730 = vmatprep.subr.bf16.mxu0 0
        %1731 = vmatpush1.bf16.msra.mxu0 %v778
        %1732 = vmatprep.subr.bf16.mxu0 0
        %1733 = vmatpush1.bf16.msra.mxu0 %v775
        %1734 = vmatprep.subr.bf16.mxu0 0
        %1735 = vmatpush1.bf16.msra.mxu0 %v772
        %1736 = vmatprep.subr.bf16.mxu0 0
        %1737 = vmatpush1.bf16.msra.mxu0 %v769
        %1738 = vmatprep.subr.bf16.mxu0 0
        %1739 = vmatpush2.bf16.msra.mxu0 0
        %1740 = vmatprep.subr.bf16.mxu0 0
        %1741 = vmatpush2.bf16.msra.mxu0 0
        %1742 = vmatprep.subr.bf16.mxu0 0
        %1743 = vmatpush2.bf16.msra.mxu0 0
        %1744 = vmatprep.subr.bf16.mxu0 0
        %1745 = vmatpush2.bf16.msra.mxu0 0
        %1746 = vmatprep.subr.bf16.mxu0 0
        %1747 = vmatpush2.bf16.msra.mxu0 0
        %1748 = vmatprep.subr.bf16.mxu0 0
        %1749 = vmatpush2.bf16.msra.mxu0 0
        %1750 = vmatprep.subr.bf16.mxu0 0
        %1751 = vmatpush2.bf16.msra.mxu0 0
        %1752 = vmatprep.subr.bf16.mxu0 0
        %1753 = vmatpush2.bf16.msra.mxu0 0
        %1754 = vmatprep.mubr.bf16.mxu0 0
        %1755 = vmatmul.mubr.bf16.gmra.mxu0 %v1680
        %v1756 = vpop.f32.mrf.mxu0
        %v1757 = vadd.f32 0.0, %v1756
        %v1758 = vpop.f32.mrf.mxu0
        %v1759 = vpop.f32.mrf.mxu0
        %v1760 = vpop.f32.mrf.mxu0
        %1761 = vdwg.mxu0
        %v1762 = vadd.f32 %v573, %v1716
        %v1763 = vxor.u32 %v1762, 2147483648
        %v1764 = vmul.f32 %v1763, 1.442695
        %v1765 = vpow.pop %v1764
        %v1766 = vadd.f32 %v1765, 1.0
        %v1767 = vrcp.pop %v1766
        %v1768 = vmul.f32 1.0, %v1767
        %v1769 = vadd.f32 %v575, %v1718
        %v1770 = vxor.u32 %v1769, 2147483648
        %v1771 = vmul.f32 %v1770, 1.442695
        %v1772 = vpow.pop %v1771
        %v1773 = vadd.f32 %v1772, 1.0
        %v1774 = vrcp.pop %v1773
        %v1775 = vmul.f32 1.0, %v1774
        %v1776 = vadd.f32 %v1757, %v914
        %v1777 = vmul.f32 %v1768, %v1776
        %v1778 = vadd.f32 %v641, %v1777
        %v1779 = vtanh.pop %v1778
        %v1780 = vsub.f32 1.0, %v1775
        %v1781 = vmul.f32 %v1780, %v1779
        %v1782 = vmul.f32 %v1775, %v1679
        %v1783 = vadd.f32 %v1781, %v1782
        %1784 = vst [vmem:[#allocation2] sm:$0xff] %v1783
        %v1786 = vcombine.high %v1783, %v1783
        %v1788 = vunpack.c.l.s4 1966171168
        %v1789 = vunpack.c.0.s8 %v1788
        %v1790 = vlaneseq
        %v1791 = vshrl.u32 %v1790, 7
        %v1792 = vsub.s32 %v1789, %v1791
        %v1793 = vrot.slane %v1783, %v1792
        %v1795 = vunpack.c.l.s4 1966171168
        %v1796 = vunpack.c.0.s8 %v1795
        %v1797 = vlaneseq
        %v1798 = vshrl.u32 %v1797, 7
        %v1799 = vsub.s32 %v1796, %v1798
        %v1800 = vrot.slane %v1786, %v1799
        %v1801 = vcombine.high %v1793, %v1793
        %v1802 = vcombine.high %v1800, %v1800
        %v1804 = vunpack.c.l.s4 1966171168
        %v1805 = vunpack.c.0.s8 %v1804
        %v1806 = vlaneseq
        %v1807 = vshrl.u32 %v1806, 7
        %v1808 = vsub.s32 %v1805, %v1807
        %v1809 = vrot.slane %v1793, %v1808
        %v1811 = vunpack.c.l.s4 1966171168
        %v1812 = vunpack.c.0.s8 %v1811
        %v1813 = vlaneseq
        %v1814 = vshrl.u32 %v1813, 7
        %v1815 = vsub.s32 %v1812, %v1814
        %v1816 = vrot.slane %v1800, %v1815
        %v1818 = vunpack.c.l.s4 1966171168
        %v1819 = vunpack.c.0.s8 %v1818
        %v1820 = vlaneseq
        %v1821 = vshrl.u32 %v1820, 7
        %v1822 = vsub.s32 %v1819, %v1821
        %v1823 = vrot.slane %v1801, %v1822
        %v1825 = vunpack.c.l.s4 1966171168
        %v1826 = vunpack.c.0.s8 %v1825
        %v1827 = vlaneseq
        %v1828 = vshrl.u32 %v1827, 7
        %v1829 = vsub.s32 %v1826, %v1828
        %v1830 = vrot.slane %v1802, %v1829
        %v1831 = vcombine.high %v1809, %v1809
        %v1832 = vcombine.high %v1816, %v1816
        %v1833 = vcombine.high %v1823, %v1823
        %v1834 = vcombine.high %v1830, %v1830
        %1843 = vst [vmem:[%s295 + $0x5] sm:$0x1] %v1809
        %1844 = vst [vmem:[%s295 + $0xd] sm:$0x1] %v1823
        %1845 = vst [vmem:[%s295 + $0x15] sm:$0x1] %v1831
        %1846 = vst [vmem:[%s295 + $0x1d] sm:$0x1] %v1833
        %1847 = vst [vmem:[%s295 + $0x25] sm:$0x1] %v1816
        %1848 = vst [vmem:[%s295 + $0x2d] sm:$0x1] %v1830
        %1849 = vst [vmem:[%s295 + $0x35] sm:$0x1] %v1832
        %1850 = vst [vmem:[%s295 + $0x3d] sm:$0x1] %v1834
        %v1851 = vld [vmem:[#allocation2] sm:$0xff]
        %v1852 = vpack.c.bf16 %v1851, %v1851
        %1853 = vmatprep.subr.bf16.mxu0 %v789
        %1854 = vmatpush1.bf16.msra.mxu0 %v788
        %1855 = vmatprep.subr.bf16.mxu0 %v786
        %1856 = vmatpush1.bf16.msra.mxu0 %v785
        %1857 = vmatprep.subr.bf16.mxu0 %v783
        %1858 = vmatpush1.bf16.msra.mxu0 %v782
        %1859 = vmatprep.subr.bf16.mxu0 %v780
        %1860 = vmatpush1.bf16.msra.mxu0 %v779
        %1861 = vmatprep.subr.bf16.mxu0 %v777
        %1862 = vmatpush1.bf16.msra.mxu0 %v776
        %1863 = vmatprep.subr.bf16.mxu0 %v774
        %1864 = vmatpush1.bf16.msra.mxu0 %v773
        %1865 = vmatprep.subr.bf16.mxu0 %v771
        %1866 = vmatpush1.bf16.msra.mxu0 %v770
        %1867 = vmatprep.subr.bf16.mxu0 %v768
        %1868 = vmatpush1.bf16.msra.mxu0 %v767
        %1869 = vmatprep.subr.bf16.mxu0 0
        %1870 = vmatpush2.bf16.msra.mxu0 0
        %1871 = vmatprep.subr.bf16.mxu0 0
        %1872 = vmatpush2.bf16.msra.mxu0 0
        %1873 = vmatprep.subr.bf16.mxu0 0
        %1874 = vmatpush2.bf16.msra.mxu0 0
        %1875 = vmatprep.subr.bf16.mxu0 0
        %1876 = vmatpush2.bf16.msra.mxu0 0
        %1877 = vmatprep.subr.bf16.mxu0 0
        %1878 = vmatpush2.bf16.msra.mxu0 0
        %1879 = vmatprep.subr.bf16.mxu0 0
        %1880 = vmatpush2.bf16.msra.mxu0 0
        %1881 = vmatprep.subr.bf16.mxu0 0
        %1882 = vmatpush2.bf16.msra.mxu0 0
        %1883 = vmatprep.subr.bf16.mxu0 0
        %1884 = vmatpush2.bf16.msra.mxu0 0
        %1885 = vmatprep.mubr.bf16.mxu0 0
        %1886 = vmatmul.mubr.bf16.gmra.mxu0 %v1852
        %v1887 = vpop.f32.mrf.mxu0
        %v1888 = vadd.f32 0.0, %v1887
        %v1889 = vpop.f32.mrf.mxu0
        %v1890 = vadd.f32 0.0, %v1889
        %v1891 = vpop.f32.mrf.mxu0
        %v1892 = vpop.f32.mrf.mxu0
        %1893 = vdwg.mxu0
        %1894 = vmatprep.subr.bf16.mxu0 0
        %1895 = vmatpush1.bf16.msra.mxu0 %v790
        %1896 = vmatprep.subr.bf16.mxu0 0
        %1897 = vmatpush1.bf16.msra.mxu0 %v787
        %1898 = vmatprep.subr.bf16.mxu0 0
        %1899 = vmatpush1.bf16.msra.mxu0 %v784
        %1900 = vmatprep.subr.bf16.mxu0 0
        %1901 = vmatpush1.bf16.msra.mxu0 %v781
        %1902 = vmatprep.subr.bf16.mxu0 0
        %1903 = vmatpush1.bf16.msra.mxu0 %v778
        %1904 = vmatprep.subr.bf16.mxu0 0
        %1905 = vmatpush1.bf16.msra.mxu0 %v775
        %1906 = vmatprep.subr.bf16.mxu0 0
        %1907 = vmatpush1.bf16.msra.mxu0 %v772
        %1908 = vmatprep.subr.bf16.mxu0 0
        %1909 = vmatpush1.bf16.msra.mxu0 %v769
        %1910 = vmatprep.subr.bf16.mxu0 0
        %1911 = vmatpush2.bf16.msra.mxu0 0
        %1912 = vmatprep.subr.bf16.mxu0 0
        %1913 = vmatpush2.bf16.msra.mxu0 0
        %1914 = vmatprep.subr.bf16.mxu0 0
        %1915 = vmatpush2.bf16.msra.mxu0 0
        %1916 = vmatprep.subr.bf16.mxu0 0
        %1917 = vmatpush2.bf16.msra.mxu0 0
        %1918 = vmatprep.subr.bf16.mxu0 0
        %1919 = vmatpush2.bf16.msra.mxu0 0
        %1920 = vmatprep.subr.bf16.mxu0 0
        %1921 = vmatpush2.bf16.msra.mxu0 0
        %1922 = vmatprep.subr.bf16.mxu0 0
        %1923 = vmatpush2.bf16.msra.mxu0 0
        %1924 = vmatprep.subr.bf16.mxu0 0
        %1925 = vmatpush2.bf16.msra.mxu0 0
        %1926 = vmatprep.mubr.bf16.mxu0 0
        %1927 = vmatmul.mubr.bf16.gmra.mxu0 %v1852
        %v1928 = vpop.f32.mrf.mxu0
        %v1929 = vadd.f32 0.0, %v1928
        %v1930 = vpop.f32.mrf.mxu0
        %v1931 = vpop.f32.mrf.mxu0
        %v1932 = vpop.f32.mrf.mxu0
        %1933 = vdwg.mxu0
        %v1934 = vadd.f32 %v579, %v1888
        %v1935 = vxor.u32 %v1934, 2147483648
        %v1936 = vmul.f32 %v1935, 1.442695
        %v1937 = vpow.pop %v1936
        %v1938 = vadd.f32 %v1937, 1.0
        %v1939 = vrcp.pop %v1938
        %v1940 = vmul.f32 1.0, %v1939
        %v1941 = vadd.f32 %v581, %v1890
        %v1942 = vxor.u32 %v1941, 2147483648
        %v1943 = vmul.f32 %v1942, 1.442695
        %v1944 = vpow.pop %v1943
        %v1945 = vadd.f32 %v1944, 1.0
        %v1946 = vrcp.pop %v1945
        %v1947 = vmul.f32 1.0, %v1946
        %v1948 = vadd.f32 %v1929, %v914
        %v1949 = vmul.f32 %v1940, %v1948
        %v1950 = vadd.f32 %v646, %v1949
        %v1951 = vtanh.pop %v1950
        %v1952 = vsub.f32 1.0, %v1947
        %v1953 = vmul.f32 %v1952, %v1951
        %v1954 = vmul.f32 %v1947, %v1851
        %v1955 = vadd.f32 %v1953, %v1954
        %1956 = vst [vmem:[#allocation2] sm:$0xff] %v1955
        %v1958 = vcombine.high %v1955, %v1955
        %v1960 = vunpack.c.l.s4 1966171168
        %v1961 = vunpack.c.0.s8 %v1960
        %v1962 = vlaneseq
        %v1963 = vshrl.u32 %v1962, 7
        %v1964 = vsub.s32 %v1961, %v1963
        %v1965 = vrot.slane %v1955, %v1964
        %v1967 = vunpack.c.l.s4 1966171168
        %v1968 = vunpack.c.0.s8 %v1967
        %v1969 = vlaneseq
        %v1970 = vshrl.u32 %v1969, 7
        %v1971 = vsub.s32 %v1968, %v1970
        %v1972 = vrot.slane %v1958, %v1971
        %v1973 = vcombine.high %v1965, %v1965
        %v1974 = vcombine.high %v1972, %v1972
        %v1976 = vunpack.c.l.s4 1966171168
        %v1977 = vunpack.c.0.s8 %v1976
        %v1978 = vlaneseq
        %v1979 = vshrl.u32 %v1978, 7
        %v1980 = vsub.s32 %v1977, %v1979
        %v1981 = vrot.slane %v1965, %v1980
        %v1983 = vunpack.c.l.s4 1966171168
        %v1984 = vunpack.c.0.s8 %v1983
        %v1985 = vlaneseq
        %v1986 = vshrl.u32 %v1985, 7
        %v1987 = vsub.s32 %v1984, %v1986
        %v1988 = vrot.slane %v1972, %v1987
        %v1990 = vunpack.c.l.s4 1966171168
        %v1991 = vunpack.c.0.s8 %v1990
        %v1992 = vlaneseq
        %v1993 = vshrl.u32 %v1992, 7
        %v1994 = vsub.s32 %v1991, %v1993
        %v1995 = vrot.slane %v1973, %v1994
        %v1997 = vunpack.c.l.s4 1966171168
        %v1998 = vunpack.c.0.s8 %v1997
        %v1999 = vlaneseq
        %v2000 = vshrl.u32 %v1999, 7
        %v2001 = vsub.s32 %v1998, %v2000
        %v2002 = vrot.slane %v1974, %v2001
        %v2003 = vcombine.high %v1981, %v1981
        %v2004 = vcombine.high %v1988, %v1988
        %v2005 = vcombine.high %v1995, %v1995
        %v2006 = vcombine.high %v2002, %v2002
        %2015 = vst [vmem:[%s295 + $0x6] sm:$0x1] %v1981
        %2016 = vst [vmem:[%s295 + $0xe] sm:$0x1] %v1995
        %2017 = vst [vmem:[%s295 + $0x16] sm:$0x1] %v2003
        %2018 = vst [vmem:[%s295 + $0x1e] sm:$0x1] %v2005
        %2019 = vst [vmem:[%s295 + $0x26] sm:$0x1] %v1988
        %2020 = vst [vmem:[%s295 + $0x2e] sm:$0x1] %v2002
        %2021 = vst [vmem:[%s295 + $0x36] sm:$0x1] %v2004
        %2022 = vst [vmem:[%s295 + $0x3e] sm:$0x1] %v2006
        %v2023 = vld [vmem:[#allocation2] sm:$0xff]
        %v2024 = vpack.c.bf16 %v2023, %v2023
        %2025 = vmatprep.subr.bf16.mxu0 %v789
        %2026 = vmatpush1.bf16.msra.mxu0 %v788
        %2027 = vmatprep.subr.bf16.mxu0 %v786
        %2028 = vmatpush1.bf16.msra.mxu0 %v785
        %2029 = vmatprep.subr.bf16.mxu0 %v783
        %2030 = vmatpush1.bf16.msra.mxu0 %v782
        %2031 = vmatprep.subr.bf16.mxu0 %v780
        %2032 = vmatpush1.bf16.msra.mxu0 %v779
        %2033 = vmatprep.subr.bf16.mxu0 %v777
        %2034 = vmatpush1.bf16.msra.mxu0 %v776
        %2035 = vmatprep.subr.bf16.mxu0 %v774
        %2036 = vmatpush1.bf16.msra.mxu0 %v773
        %2037 = vmatprep.subr.bf16.mxu0 %v771
        %2038 = vmatpush1.bf16.msra.mxu0 %v770
        %2039 = vmatprep.subr.bf16.mxu0 %v768
        %2040 = vmatpush1.bf16.msra.mxu0 %v767
        %2041 = vmatprep.subr.bf16.mxu0 0
        %2042 = vmatpush2.bf16.msra.mxu0 0
        %2043 = vmatprep.subr.bf16.mxu0 0
        %2044 = vmatpush2.bf16.msra.mxu0 0
        %2045 = vmatprep.subr.bf16.mxu0 0
        %2046 = vmatpush2.bf16.msra.mxu0 0
        %2047 = vmatprep.subr.bf16.mxu0 0
        %2048 = vmatpush2.bf16.msra.mxu0 0
        %2049 = vmatprep.subr.bf16.mxu0 0
        %2050 = vmatpush2.bf16.msra.mxu0 0
        %2051 = vmatprep.subr.bf16.mxu0 0
        %2052 = vmatpush2.bf16.msra.mxu0 0
        %2053 = vmatprep.subr.bf16.mxu0 0
        %2054 = vmatpush2.bf16.msra.mxu0 0
        %2055 = vmatprep.subr.bf16.mxu0 0
        %2056 = vmatpush2.bf16.msra.mxu0 0
        %2057 = vmatprep.mubr.bf16.mxu0 0
        %2058 = vmatmul.mubr.bf16.gmra.mxu0 %v2024
        %v2059 = vpop.f32.mrf.mxu0
        %v2060 = vadd.f32 0.0, %v2059
        %v2061 = vpop.f32.mrf.mxu0
        %v2062 = vadd.f32 0.0, %v2061
        %v2063 = vpop.f32.mrf.mxu0
        %v2064 = vpop.f32.mrf.mxu0
        %2065 = vdwg.mxu0
        %2066 = vmatprep.subr.bf16.mxu0 0
        %2067 = vmatpush1.bf16.msra.mxu0 %v790
        %2068 = vmatprep.subr.bf16.mxu0 0
        %2069 = vmatpush1.bf16.msra.mxu0 %v787
        %2070 = vmatprep.subr.bf16.mxu0 0
        %2071 = vmatpush1.bf16.msra.mxu0 %v784
        %2072 = vmatprep.subr.bf16.mxu0 0
        %2073 = vmatpush1.bf16.msra.mxu0 %v781
        %2074 = vmatprep.subr.bf16.mxu0 0
        %2075 = vmatpush1.bf16.msra.mxu0 %v778
        %2076 = vmatprep.subr.bf16.mxu0 0
        %2077 = vmatpush1.bf16.msra.mxu0 %v775
        %2078 = vmatprep.subr.bf16.mxu0 0
        %2079 = vmatpush1.bf16.msra.mxu0 %v772
        %2080 = vmatprep.subr.bf16.mxu0 0
        %2081 = vmatpush1.bf16.msra.mxu0 %v769
        %2082 = vmatprep.subr.bf16.mxu0 0
        %2083 = vmatpush2.bf16.msra.mxu0 0
        %2084 = vmatprep.subr.bf16.mxu0 0
        %2085 = vmatpush2.bf16.msra.mxu0 0
        %2086 = vmatprep.subr.bf16.mxu0 0
        %2087 = vmatpush2.bf16.msra.mxu0 0
        %2088 = vmatprep.subr.bf16.mxu0 0
        %2089 = vmatpush2.bf16.msra.mxu0 0
        %2090 = vmatprep.subr.bf16.mxu0 0
        %2091 = vmatpush2.bf16.msra.mxu0 0
        %2092 = vmatprep.subr.bf16.mxu0 0
        %2093 = vmatpush2.bf16.msra.mxu0 0
        %2094 = vmatprep.subr.bf16.mxu0 0
        %2095 = vmatpush2.bf16.msra.mxu0 0
        %2096 = vmatprep.subr.bf16.mxu0 0
        %2097 = vmatpush2.bf16.msra.mxu0 0
        %2098 = vmatprep.mubr.bf16.mxu0 0
        %2099 = vmatmul.mubr.bf16.gmra.mxu0 %v2024
        %v2100 = vpop.f32.mrf.mxu0
        %v2101 = vadd.f32 0.0, %v2100
        %v2102 = vpop.f32.mrf.mxu0
        %v2103 = vpop.f32.mrf.mxu0
        %v2104 = vpop.f32.mrf.mxu0
        %2105 = vdwg.mxu0
        %v2106 = vadd.f32 %v583, %v2060
        %v2107 = vxor.u32 %v2106, 2147483648
        %v2108 = vmul.f32 %v2107, 1.442695
        %v2109 = vpow.pop %v2108
        %v2110 = vadd.f32 %v2109, 1.0
        %v2111 = vrcp.pop %v2110
        %v2112 = vmul.f32 1.0, %v2111
        %v2113 = vadd.f32 %v585, %v2062
        %v2114 = vxor.u32 %v2113, 2147483648
        %v2115 = vmul.f32 %v2114, 1.442695
        %v2116 = vpow.pop %v2115
        %v2117 = vadd.f32 %v2116, 1.0
        %v2118 = vrcp.pop %v2117
        %v2119 = vmul.f32 1.0, %v2118
        %v2120 = vadd.f32 %v2101, %v914
        %v2121 = vmul.f32 %v2112, %v2120
        %v2122 = vadd.f32 %v649, %v2121
        %v2123 = vtanh.pop %v2122
        %v2124 = vsub.f32 1.0, %v2119
        %v2125 = vmul.f32 %v2124, %v2123
        %v2126 = vmul.f32 %v2119, %v2023
        %v2127 = vadd.f32 %v2125, %v2126
        %2128 = vst [vmem:[#allocation2] sm:$0xff] %v2127
        %v2130 = vcombine.high %v2127, %v2127
        %v2132 = vunpack.c.l.s4 1966171168
        %v2133 = vunpack.c.0.s8 %v2132
        %v2134 = vlaneseq
        %v2135 = vshrl.u32 %v2134, 7
        %v2136 = vsub.s32 %v2133, %v2135
        %v2137 = vrot.slane %v2127, %v2136
        %v2139 = vunpack.c.l.s4 1966171168
        %v2140 = vunpack.c.0.s8 %v2139
        %v2141 = vlaneseq
        %v2142 = vshrl.u32 %v2141, 7
        %v2143 = vsub.s32 %v2140, %v2142
        %v2144 = vrot.slane %v2130, %v2143
        %v2145 = vcombine.high %v2137, %v2137
        %v2146 = vcombine.high %v2144, %v2144
        %v2148 = vunpack.c.l.s4 1966171168
        %v2149 = vunpack.c.0.s8 %v2148
        %v2150 = vlaneseq
        %v2151 = vshrl.u32 %v2150, 7
        %v2152 = vsub.s32 %v2149, %v2151
        %v2153 = vrot.slane %v2137, %v2152
        %v2155 = vunpack.c.l.s4 1966171168
        %v2156 = vunpack.c.0.s8 %v2155
        %v2157 = vlaneseq
        %v2158 = vshrl.u32 %v2157, 7
        %v2159 = vsub.s32 %v2156, %v2158
        %v2160 = vrot.slane %v2144, %v2159
        %v2162 = vunpack.c.l.s4 1966171168
        %v2163 = vunpack.c.0.s8 %v2162
        %v2164 = vlaneseq
        %v2165 = vshrl.u32 %v2164, 7
        %v2166 = vsub.s32 %v2163, %v2165
        %v2167 = vrot.slane %v2145, %v2166
        %v2169 = vunpack.c.l.s4 1966171168
        %v2170 = vunpack.c.0.s8 %v2169
        %v2171 = vlaneseq
        %v2172 = vshrl.u32 %v2171, 7
        %v2173 = vsub.s32 %v2170, %v2172
        %v2174 = vrot.slane %v2146, %v2173
        %v2175 = vcombine.high %v2153, %v2153
        %v2176 = vcombine.high %v2160, %v2160
        %v2177 = vcombine.high %v2167, %v2167
        %v2178 = vcombine.high %v2174, %v2174
        %2187 = vst [vmem:[%s295 + $0x7] sm:$0x1] %v2153
        %2188 = vst [vmem:[%s295 + $0xf] sm:$0x1] %v2167
        %2189 = vst [vmem:[%s295 + $0x17] sm:$0x1] %v2175
        %2190 = vst [vmem:[%s295 + $0x1f] sm:$0x1] %v2177
        %2191 = vst [vmem:[%s295 + $0x27] sm:$0x1] %v2160
        %2192 = vst [vmem:[%s295 + $0x2f] sm:$0x1] %v2174
        %2193 = vst [vmem:[%s295 + $0x37] sm:$0x1] %v2176
        %2194 = vst [vmem:[%s295 + $0x3f] sm:$0x1] %v2178
        %v2195 = vld [vmem:[#allocation2] sm:$0xff]
        %2196 = vst [vmem:[#allocation10] sm:$0xff] %v2195
        %s2197 = sand.u32 %s144, 1
        %s2198 = scalar_lea.sflag [#allocation5], %s2197
        %s2199 = sand.u32 %s144, 1
        %s2200 = smul.addr %s2199, 64
        %s2201 = scalar_lea.vmem [#allocation9], %s2200
        // Predicated region
        $region57: #{tpu_custom_call.1} parent=39 // pred_check
          %p2202 = pneg %p154
        $region58: #{tpu_custom_call.1} parent=39 // pred_check_branch
          %2204 = sbr.rel (%p2202) target = $region60
        $region59: #{tpu_custom_call.1} parent=39 // pred_region
          %s2206 = ssub.s32 1024, 1024
          %2207 = vsyncadd %s2198, %s2206
          %s2208 = smul.addr %s26, 128
          %s2209 = scalar_lea.hbm %s5, %s2208
          %s2210 = sshll.u32 %s2201, 4
          %s2211 = int_to_ptr.vmem [resolvable:$true] %s2210
          %2216 = dma.vmem_to_hbm [thread:$0]  %s2211, 1024, %s2209, %s2198, 128, 256, 8
        $region60: #{tpu_custom_call.1} parent=39 // pred_fallthru
          _
        // Predicated region
        $region61: #{tpu_custom_call.1} parent=39 // pred_check
          %p2217 = pneg %p175
        $region62: #{tpu_custom_call.1} parent=39 // pred_check_branch
          %2219 = sbr.rel (%p2217) target = $region64
        $region63: #{tpu_custom_call.1} parent=39 // pred_region
          %s2221 = ssub.s32 128, 128
          %2222 = vsyncadd [#allocation11], %s2221
          %s2224 = sshll.u32 [#allocation10], 4
          %s2225 = int_to_ptr.vmem [resolvable:$true] %s2224
          %2227 = dma.vmem_to_hbm [thread:$0]  %s2225, 128, %s6, [#allocation11]
        $region64: #{tpu_custom_call.1} parent=39 // pred_fallthru
          _
        // Predicated region
        $region65: #{tpu_custom_call.1} parent=39 // pred_check
          %p2228 = pneg %p175
        $region66: #{tpu_custom_call.1} parent=39 // pred_check_branch
          %2230 = sbr.rel (%p2228) target = $region68
        $region67: #{tpu_custom_call.1} parent=39 // pred_region
          %2231 = dma.done [#allocation11], 128
        $region68: #{tpu_custom_call.1} parent=39 // pred_fallthru
          _
      $region40: #{tpu_custom_call.1} parent=5 // pred_fallthru
        _
      %p2232 = scmp.le.s32.totalorder 2, %s21
      // Predicated region
      $region69: #{tpu_custom_call.1} parent=5 // pred_check
        %p2233 = pneg %p2232
      $region70: #{tpu_custom_call.1} parent=5 // pred_check_branch
        %2235 = sbr.rel (%p2233) target = $region72
      $region71: #{tpu_custom_call.1} parent=5 // pred_region
        %s2236 = ssub.s32 %s21, 2
        // Predicated region
        $region73: #{tpu_custom_call.1} parent=71 // pred_check
          %p2237 = pneg %p160
        $region74: #{tpu_custom_call.1} parent=71 // pred_check_branch
          %2239 = sbr.rel (%p2237) target = $region76
        $region75: #{tpu_custom_call.1} parent=71 // pred_region
          %s2240 = sand.u32 %s145, 1
          %s2241 = scalar_lea.sflag [#allocation5], %s2240
          %s2242 = sand.u32 %s145, 1
          %s2243 = smul.addr %s2242, 64
          %s2244 = scalar_lea.vmem [#allocation9], %s2243
          %2245 = dma.done %s2241, 1024
        $region76: #{tpu_custom_call.1} parent=71 // pred_fallthru
          _
      $region72: #{tpu_custom_call.1} parent=5 // pred_fallthru
        _
    $region6: #{tpu_custom_call.1} parent=1 // loop_footer
      %s25 = sadd.s32 1, %s21
    $region7: #{tpu_custom_call.1} parent=1 // loop_footer_branch
      %20 = sbr.rel target = $region3
    $region8: #{tpu_custom_call.1} parent=1 // loop_exit
      _
    %2246 = vsyncpa [#allocation4], 1
    %s2247 = scalar_lea.sflag [#allocation4], 1
    %2248 = vsyncpa %s2247, 1
    %2249 = vsyncpa [#allocation7], 1
    %2250 = vsyncpa [#allocation5], 1
    %s2251 = scalar_lea.sflag [#allocation5], 1
    %2252 = vsyncpa %s2251, 1
    %2253 = vsyncpa [#allocation11], 1

</llo_original>
